<compile_context>
chip_gen: v5e
topology: v5e:2x2
jax: 0.10.0
libtpu: 0.0.40
codegen_flags: <defaults>
</compile_context>

<pallas_src>
from functools import partial

import jax
import jax.numpy as jnp
from jax import lax
from jax.experimental import pallas as pl
from jax.experimental.pallas import tpu as pltpu


def _vtm_attn_kernel(x_ref, kv_ref, wq_ref, wkv_ref, wp_ref, bp_ref,
                     xout_ref, attn_ref, merged_ref, *,
                     num_heads, batch, n_kv):
    """One batch-block of VTM_ATTN.

    x_ref    : (batch*N, D)        bf16  query source, batch-flattened
    kv_ref   : (batch*Nkv_pad, D)  bf16  key/value source, key dim zero-padded to 128
    wq_ref   : (D, D)              bf16  pre-transposed query weight with the
                                          softmax scale folded in (x @ (Wq^T * scale))
    wkv_ref  : (D, 2D)             bf16  pre-transposed, fused [Wk^T | Wv^T]
    wp_ref   : (D, D)              bf16  pre-transposed proj weight
    bp_ref   : (1, D)              f32   proj bias
    xout_ref : (batch*N, D)        f32
    attn_ref : (batch, H, N, Nkv_pad) f32  pre-dropout softmax, lane-dense key dim
    merged_ref: (batch*N, D)       f32   VMEM scratch for concatenated head outputs
    """
    m_x, D = x_ref.shape
    m_kv, _ = kv_ref.shape
    n_q = m_x // batch
    nkv_pad = m_kv // batch
    hd = D // num_heads

    # Fused / pre-transposed projections: bf16 in, f32 accumulation.
    # The softmax scale is already folded into wq_ref, so q is pre-scaled.
    q = jnp.dot(x_ref[...], wq_ref[...], preferred_element_type=jnp.float32)      # (m_x, D)
    kvp = jnp.dot(kv_ref[...], wkv_ref[...], preferred_element_type=jnp.float32)  # (m_kv, 2D)

    qb = q.astype(jnp.bfloat16)
    kvb = kvp.astype(jnp.bfloat16)      # [:, :D] = keys, [:, D:] = values

    # Key-padding mask (padded kv rows must get zero softmax mass). Hoisted
    # outside the head/batch loops (broadcasts are not CSE'd).
    if n_kv < nkv_pad:
        kmask = lax.broadcasted_iota(jnp.int32, (n_q, nkv_pad), 1) < n_kv
    else:
        kmask = None

    for b in range(batch):                      # static unroll (tiny batch)
        q_rows = slice(b * n_q, (b + 1) * n_q)
        k_rows = slice(b * nkv_pad, (b + 1) * nkv_pad)
        qb_b = qb[q_rows, :]                    # (n_q, D)     — one row slice / batch
        kb_b = kvb[k_rows, :D]                  # (nkv_pad, D)
        vb_b = kvb[k_rows, D:]                  # (nkv_pad, D)
        for h in range(num_heads):              # static unroll over heads
            cols = slice(h * hd, (h + 1) * hd)
            qh = qb_b[:, cols]                  # (n_q, hd)
            kh = kb_b[:, cols]                  # (nkv_pad, hd)
            vh = vb_b[:, cols]                  # (nkv_pad, hd)

            # q @ k^T without an explicit transpose (contract dim 1 with dim 1).
            s = lax.dot_general(qh, kh, (((1,), (1,)), ((), ())),
                                preferred_element_type=jnp.float32)
            if kmask is not None:
                s = jnp.where(kmask, s, -1e30)
            s = s - jnp.max(s, axis=-1, keepdims=True)
            e = jnp.exp(s)                                          # f32 softmax math
            p = e * pl.reciprocal(jnp.sum(e, axis=-1, keepdims=True), approx=True)

            # Pre-dropout softmax, stored lane-dense over the padded key dim;
            # the wrapper slices back to the first N key columns
            # (== attn.data[:, :, :, :attn.shape[2]]).
            attn_ref[b, h, :, :] = p

            # TODO(synk): attn_drop (p=0.1) omitted — stochastic mask treated as
            # identity (eval behaviour); stored attention stays pre-dropout.
            oh = jnp.dot(p.astype(jnp.bfloat16), vh,
                         preferred_element_type=jnp.float32)        # (n_q, hd)
            merged_ref[q_rows, cols] = oh

    merged = merged_ref[...].astype(jnp.bfloat16)                   # (m_x, D)
    out = jnp.dot(merged, wp_ref[...], preferred_element_type=jnp.float32)
    out = out + bp_ref[...]
    # TODO(synk): proj_drop (p=0.1) omitted for the same reason.
    xout_ref[...] = out.astype(xout_ref.dtype)


def vtm_attention(x, kv, wq, wk, wv, wp, bp, *, num_heads, batch_block=None):
    """Pallas-backed VTM_ATTN.forward(x, kv=kv) -> (x_out, attn_out)."""
    B, N, D = x.shape
    Bkv, Nkv, Dkv = kv.shape
    assert (Bkv, Dkv) == (B, D) and D % num_heads == 0
    hd = D // num_heads
    scale = float(hd ** (-0.5))

    nkv_pad = ((Nkv + 127) // 128) * 128        # lane-dense key dim

    # Batch block per grid step.  Default: the whole batch in one step (best on
    # v5e/v6e, 1 TensorCore).  On v7x one may pass batch_block=B//2 to shard the
    # 'parallel' axis across the two TensorCores when (batch_block*N) % 8 == 0.
    bb = B if batch_block is None else batch_block
    assert B % bb == 0
    assert bb == B or (bb * N) % 8 == 0, "batch_block*N must be sublane-aligned"
    grid = (B // bb,)

    # Wrapper-side layout work (cheap XLA ops; keeps relayout out of the kernel):
    # flatten batch into the matmul M dim, pad keys to 128, pre-transpose/fuse
    # weights (softmax scale folded into Wq), cast MXU inputs to bf16.
    x2 = x.reshape(B * N, D).astype(jnp.bfloat16)
    kv_p = jnp.pad(kv, ((0, 0), (0, nkv_pad - Nkv), (0, 0)))
    kv2 = kv_p.reshape(B * nkv_pad, D).astype(jnp.bfloat16)
    wq_t = (wq.T * scale).astype(jnp.bfloat16)                           # (D, D), pre-scaled
    wkv_t = jnp.concatenate([wk.T, wv.T], axis=1).astype(jnp.bfloat16)   # (D, 2D)
    wp_t = wp.T.astype(jnp.bfloat16)                                     # (D, D)
    bp_f = bp.reshape(1, D).astype(jnp.float32)

    flops = (2 * B * N * D * D                      # q projection
             + 2 * B * nkv_pad * D * (2 * D)        # fused k/v projection
             + 4 * B * num_heads * N * nkv_pad * hd # q@k^T and p@v
             + 2 * B * N * D * D)                   # output projection
    transcendentals = B * num_heads * N * nkv_pad   # exp
    bytes_accessed = (2 * (x2.size + kv2.size + wq_t.size + wkv_t.size + wp_t.size)
                      + 4 * (bp_f.size + B * N * D + B * num_heads * N * nkv_pad))

    kernel = partial(_vtm_attn_kernel, num_heads=num_heads,
                     batch=bb, n_kv=Nkv)

    out_shapes = (
        jax.ShapeDtypeStruct((B * N, D), x.dtype),
        jax.ShapeDtypeStruct((B, num_heads, N, nkv_pad), jnp.float32),
    )

    xout2, attn_full = pl.pallas_call(
        kernel,
        out_shape=out_shapes,
        grid_spec=pltpu.PrefetchScalarGridSpec(
            num_scalar_prefetch=0,
            grid=grid,
            in_specs=[
                pl.BlockSpec((bb * N, D), lambda i: (i, 0)),         # x (flattened)
                pl.BlockSpec((bb * nkv_pad, D), lambda i: (i, 0)),   # kv (flattened, padded)
                pl.BlockSpec((D, D), lambda i: (0, 0)),              # Wq^T * scale
                pl.BlockSpec((D, 2 * D), lambda i: (0, 0)),          # [Wk^T | Wv^T]
                pl.BlockSpec((D, D), lambda i: (0, 0)),              # Wproj^T
                pl.BlockSpec((1, D), lambda i: (0, 0)),              # bproj
            ],
            out_specs=[
                pl.BlockSpec((bb * N, D), lambda i: (i, 0)),
                pl.BlockSpec((bb, num_heads, N, nkv_pad), lambda i: (i, 0, 0, 0)),
            ],
            scratch_shapes=[pltpu.VMEM((bb * N, D), jnp.float32)],   # merged head outputs
        ),
        compiler_params=pltpu.CompilerParams(
            dimension_semantics=("parallel",),
            vmem_limit_bytes=32 * 1024 * 1024,
        ),
        cost_estimate=pl.CostEstimate(flops=flops,
                                      transcendentals=transcendentals,
                                      bytes_accessed=bytes_accessed),
    )(x2, kv2, wq_t, wkv_t, wp_t, bp_f)

    x_out = xout2.reshape(B, N, D)
    attn_out = attn_full[:, :, :, :N]    # == attn.data[:, :, :, :attn.shape[2]]
    return x_out, attn_out


def register_memory(src, attn, *, kappa, has_cls):
    """Faithful JAX port of VerticalTokenMixupLayer.register_memory (topk+gather).

    Note: matching the PyTorch reference exactly, the top_idx from the CLS-row
    saliency (computed over columns 1..N-1) indexes `src` WITHOUT a +1 offset —
    the original code does the same, so this is intentionally kept as-is.
    """
    if has_cls:
        saliency = attn.mean(axis=1)[:, 0, 1:]        # (B, N-1)
    else:
        saliency = attn.mean(axis=(1, 2))             # (B, N)
    _, top_idx = jax.lax.top_k(saliency, kappa)       # (B, kappa), largest, sorted
    salient_tokens = jnp.take_along_axis(src, top_idx[:, :, None], axis=1)
    return salient_tokens


def vertical_token_mixup_forward(src, vtm_memories, params, *, num_heads, kappa,
                                 layer_index, apply_layers, has_cls=True,
                                 training=True):
    """VerticalTokenMixupLayer.forward for the layer_index-in-apply_layers case.

    Returns ((x, attn_out), new_memory_tokens_or_None).
    """
    wq, wk, wv, wp, bp = params
    if training and (layer_index in apply_layers):
        # vtm_tokens = stack(memories): (L, B, T, D) -> (B, L*T, D)
        vtm_tokens = jnp.stack(vtm_memories, axis=0)
        L, B, T, D = vtm_tokens.shape
        vtm_tokens = jnp.transpose(vtm_tokens, (1, 0, 2, 3)).reshape(B, L * T, D)
        # (vtm_stopgrad handled by lax.stop_gradient in a training setup; forward-identical)
        kv = jnp.concatenate([src, vtm_tokens], axis=1)
        x, attn = vtm_attention(src, kv, wq, wk, wv, wp, bp, num_heads=num_heads)
        new_memory = None
        if layer_index < max(apply_layers):
            new_memory = register_memory(src, attn, kappa=kappa, has_cls=has_cls)
        return (x, attn), new_memory
    else:
        # Non-VTM path: plain self-attention (kv = src)
        x, attn = vtm_attention(src, src, wq, wk, wv, wp, bp, num_heads=num_heads)
        new_memory = None
        if training and layer_index < max(apply_layers):
            new_memory = register_memory(src, attn, kappa=kappa, has_cls=has_cls)
        return (x, attn), new_memory


if __name__ == "__main__":
    key = jax.random.PRNGKey(0)
    ks = jax.random.split(key, 8)

    # Small shapes consistent with the module:
    B, N, D, H = 2, 9, 32, 4          # 8 patch tokens + 1 CLS, dim 32, 4 heads
    kappa = 3
    layer_index, apply_layers = 2, [2, 3]

    src = jax.random.normal(ks[0], (B, N, D), dtype=jnp.float32)
    # __VTM_MEMORY__ contents from two earlier layers (kappa tokens each)
    vtm_memories = [
        jax.random.normal(ks[1], (B, kappa, D), dtype=jnp.float32),
        jax.random.normal(ks[2], (B, kappa, D), dtype=jnp.float32),
    ]

    # Deterministic parameter init (VTM_ATTN(dim=32, num_heads=4))
    wq = 0.02 * jax.random.normal(ks[3], (D, D), dtype=jnp.float32)
    wk = 0.02 * jax.random.normal(ks[4], (D, D), dtype=jnp.float32)
    wv = 0.02 * jax.random.normal(ks[5], (D, D), dtype=jnp.float32)
    wp = 0.02 * jax.random.normal(ks[6], (D, D), dtype=jnp.float32)
    bp = jnp.zeros((1, D), dtype=jnp.float32)
    params = (wq, wk, wv, wp, bp)

    (x_out, attn_out), new_memory = vertical_token_mixup_forward(
        src, vtm_memories, params,
        num_heads=H, kappa=kappa,
        layer_index=layer_index, apply_layers=apply_layers,
        has_cls=True, training=True,
    )

    jax.block_until_ready((x_out, attn_out, new_memory))

    assert x_out.shape == (B, N, D)
    assert attn_out.shape == (B, H, N, N)
    assert new_memory.shape == (B, kappa, D)
    # Softmax rows over the valid keys must behave (mask sanity check).
    assert bool(jnp.all(jnp.isfinite(x_out)))
    assert bool(jnp.all(jnp.isfinite(attn_out)))
    print("KERNEL_OK")
</pallas_src>

<mosaic_0001>
module attributes {stable_mosaic.version = 11 : i64} {
  func.func @_vtm_attn_kernel(%arg0: i32, %arg1: memref<18x32xbf16, #tpu.memory_space<vmem>>, %arg2: memref<256x32xbf16, #tpu.memory_space<vmem>>, %arg3: memref<32x32xbf16, #tpu.memory_space<vmem>>, %arg4: memref<32x64xbf16, #tpu.memory_space<vmem>>, %arg5: memref<32x32xbf16, #tpu.memory_space<vmem>>, %arg6: memref<1x32xf32, #tpu.memory_space<vmem>>, %arg7: memref<18x32xf32, #tpu.memory_space<vmem>>, %arg8: memref<2x4x9x128xf32, #tpu.memory_space<vmem>>, %arg9: memref<18x32xf32, #tpu.memory_space<vmem>>) attributes {dimension_semantics = [#tpu.dimension_semantics<parallel>], iteration_bounds = array<i64: 1>, scalar_prefetch = 0 : i64, scratch_operands = 1 : i64, tpu.core_type = #tpu.core_type<tc>, window_params = [{transform_indices = @transform_0, window_bounds = array<i64: 18, 32>}, {transform_indices = @transform_1, window_bounds = array<i64: 256, 32>}, {pipeline_mode = #tpu.pipeline_mode<synchronous>, transform_indices = @transform_2, window_bounds = array<i64: 32, 32>}, {pipeline_mode = #tpu.pipeline_mode<synchronous>, transform_indices = @transform_3, window_bounds = array<i64: 32, 64>}, {pipeline_mode = #tpu.pipeline_mode<synchronous>, transform_indices = @transform_4, window_bounds = array<i64: 32, 32>}, {pipeline_mode = #tpu.pipeline_mode<synchronous>, transform_indices = @transform_5, window_bounds = array<i64: 1, 32>}, {transform_indices = @transform_6, window_bounds = array<i64: 18, 32>}, {transform_indices = @transform_7, window_bounds = array<i64: 2, 4, 9, 128>}]} {
    %c0 = arith.constant 0 : index
    %c0_0 = arith.constant 0 : index
    %0 = vector.load %arg1[%c0, %c0_0] : memref<18x32xbf16, #tpu.memory_space<vmem>>, vector<18x32xbf16>
    %c0_1 = arith.constant 0 : index
    %c0_2 = arith.constant 0 : index
    %1 = vector.load %arg3[%c0_1, %c0_2] : memref<32x32xbf16, #tpu.memory_space<vmem>>, vector<32x32xbf16>
    %cst = arith.constant dense<0.000000e+00> : vector<18x32xf32>
    %2 = tpu.matmul %0, %1, %cst {dimension_numbers = #tpu.dot_dimension_numbers<[1], [0], [0], [1], [0, 0, 1, 1], [], []>} : vector<18x32xbf16>, vector<32x32xbf16>, vector<18x32xf32> -> vector<18x32xf32>
    %c0_3 = arith.constant 0 : index
    %c0_4 = arith.constant 0 : index
    %3 = vector.load %arg2[%c0_3, %c0_4] : memref<256x32xbf16, #tpu.memory_space<vmem>>, vector<256x32xbf16>
    %c0_5 = arith.constant 0 : index
    %c0_6 = arith.constant 0 : index
    %4 = vector.load %arg4[%c0_5, %c0_6] : memref<32x64xbf16, #tpu.memory_space<vmem>>, vector<32x64xbf16>
    %cst_7 = arith.constant dense<0.000000e+00> : vector<256x64xf32>
    %5 = tpu.matmul %3, %4, %cst_7 {dimension_numbers = #tpu.dot_dimension_numbers<[1], [0], [0], [1], [0, 0, 1, 1], [], []>} : vector<256x32xbf16>, vector<32x64xbf16>, vector<256x64xf32> -> vector<256x64xf32>
    %6 = arith.truncf %2 : vector<18x32xf32> to vector<18x32xbf16>
    %7 = arith.truncf %5 : vector<256x64xf32> to vector<256x64xbf16>
    %8 = tpu.iota {dimensions = array<i32: 1>} : vector<9x128xi32>
    %c15_i32 = arith.constant 15 : i32
    %9 = vector.broadcast %c15_i32 : i32 to vector<9x128xi32>
    %10 = arith.cmpi slt, %8, %9 : vector<9x128xi32>
    %11 = vector.extract_strided_slice %6 {offsets = [0, 0], sizes = [9, 32], strides = [1, 1]} : vector<18x32xbf16> to vector<9x32xbf16>
    %12 = vector.extract_strided_slice %7 {offsets = [0, 0], sizes = [128, 32], strides = [1, 1]} : vector<256x64xbf16> to vector<128x32xbf16>
    %13 = vector.extract_strided_slice %7 {offsets = [0, 32], sizes = [128, 32], strides = [1, 1]} : vector<256x64xbf16> to vector<128x32xbf16>
    %14 = vector.extract_strided_slice %11 {offsets = [0, 0], sizes = [9, 8], strides = [1, 1]} : vector<9x32xbf16> to vector<9x8xbf16>
    %15 = vector.extract_strided_slice %12 {offsets = [0, 0], sizes = [128, 8], strides = [1, 1]} : vector<128x32xbf16> to vector<128x8xbf16>
    %16 = vector.extract_strided_slice %13 {offsets = [0, 0], sizes = [128, 8], strides = [1, 1]} : vector<128x32xbf16> to vector<128x8xbf16>
    %cst_8 = arith.constant dense<0.000000e+00> : vector<9x128xf32>
    %17 = tpu.matmul %14, %15, %cst_8 {dimension_numbers = #tpu.dot_dimension_numbers<[1], [1], [0], [0], [0, 0, 1, 0], [], []>} : vector<9x8xbf16>, vector<128x8xbf16>, vector<9x128xf32> -> vector<9x128xf32>
    %cst_9 = arith.constant -1.000000e+30 : f32
    %18 = vector.broadcast %cst_9 : f32 to vector<9x128xf32>
    %19 = arith.select %10, %17, %18 : vector<9x128xi1>, vector<9x128xf32>
    %cst_10 = arith.constant dense<0xFF800000> : vector<9xf32>
    %20 = vector.multi_reduction <maximumf>, %19, %cst_10 [1] : vector<9x128xf32> to vector<9xf32>
    %21 = vector.shape_cast %20 : vector<9xf32> to vector<9x1xf32>
    %22 = vector.broadcast %21 : vector<9x1xf32> to vector<9x128xf32>
    %23 = arith.subf %19, %22 : vector<9x128xf32>
    %24 = math.exp %23 : vector<9x128xf32>
    %cst_11 = arith.constant dense<0.000000e+00> : vector<9xf32>
    %25 = vector.multi_reduction <add>, %24, %cst_11 [1] : vector<9x128xf32> to vector<9xf32>
    %26 = vector.shape_cast %25 : vector<9xf32> to vector<9x1xf32>
    %27 = tpu.reciprocal %26 {approx = true} : vector<9x1xf32> -> vector<9x1xf32>
    %28 = vector.broadcast %27 : vector<9x1xf32> to vector<9x128xf32>
    %29 = arith.mulf %24, %28 : vector<9x128xf32>
    %c0_12 = arith.constant 0 : index
    %c0_13 = arith.constant 0 : index
    %c0_14 = arith.constant 0 : index
    %c0_15 = arith.constant 0 : index
    %30 = vector.load %arg8[%c0_12, %c0_13, %c0_14, %c0_15] : memref<2x4x9x128xf32, #tpu.memory_space<vmem>>, vector<1x1x9x128xf32>
    %31 = vector.shape_cast %30 : vector<1x1x9x128xf32> to vector<9x128xf32>
    %32 = vector.shape_cast %29 : vector<9x128xf32> to vector<1x1x9x128xf32>
    tpu.vector_store %arg8[%c0_12, %c0_13, %c0_14, %c0_15], %32 {strides = array<i32>} : memref<2x4x9x128xf32, #tpu.memory_space<vmem>>, vector<1x1x9x128xf32>,
    %33 = arith.truncf %29 : vector<9x128xf32> to vector<9x128xbf16>
    %cst_16 = arith.constant dense<0.000000e+00> : vector<9x8xf32>
    %34 = tpu.matmul %33, %16, %cst_16 {dimension_numbers = #tpu.dot_dimension_numbers<[1], [0], [0], [1], [0, 0, 1, 1], [], []>} : vector<9x128xbf16>, vector<128x8xbf16>, vector<9x8xf32> -> vector<9x8xf32>
    %c0_17 = arith.constant 0 : index
    %c0_18 = arith.constant 0 : index
    %35 = vector.load %arg9[%c0_17, %c0_18] : memref<18x32xf32, #tpu.memory_space<vmem>>, vector<9x8xf32>
    tpu.vector_store %arg9[%c0_17, %c0_18], %34 {strides = array<i32>} : memref<18x32xf32, #tpu.memory_space<vmem>>, vector<9x8xf32>,
    %36 = vector.extract_strided_slice %11 {offsets = [0, 8], sizes = [9, 8], strides = [1, 1]} : vector<9x32xbf16> to vector<9x8xbf16>
    %37 = vector.extract_strided_slice %12 {offsets = [0, 8], sizes = [128, 8], strides = [1, 1]} : vector<128x32xbf16> to vector<128x8xbf16>
    %38 = vector.extract_strided_slice %13 {offsets = [0, 8], sizes = [128, 8], strides = [1, 1]} : vector<128x32xbf16> to vector<128x8xbf16>
    %cst_19 = arith.constant dense<0.000000e+00> : vector<9x128xf32>
    %39 = tpu.matmul %36, %37, %cst_19 {dimension_numbers = #tpu.dot_dimension_numbers<[1], [1], [0], [0], [0, 0, 1, 0], [], []>} : vector<9x8xbf16>, vector<128x8xbf16>, vector<9x128xf32> -> vector<9x128xf32>
    %cst_20 = arith.constant -1.000000e+30 : f32
    %40 = vector.broadcast %cst_20 : f32 to vector<9x128xf32>
    %41 = arith.select %10, %39, %40 : vector<9x128xi1>, vector<9x128xf32>
    %cst_21 = arith.constant dense<0xFF800000> : vector<9xf32>
    %42 = vector.multi_reduction <maximumf>, %41, %cst_21 [1] : vector<9x128xf32> to vector<9xf32>
    %43 = vector.shape_cast %42 : vector<9xf32> to vector<9x1xf32>
    %44 = vector.broadcast %43 : vector<9x1xf32> to vector<9x128xf32>
    %45 = arith.subf %41, %44 : vector<9x128xf32>
    %46 = math.exp %45 : vector<9x128xf32>
    %cst_22 = arith.constant dense<0.000000e+00> : vector<9xf32>
    %47 = vector.multi_reduction <add>, %46, %cst_22 [1] : vector<9x128xf32> to vector<9xf32>
    %48 = vector.shape_cast %47 : vector<9xf32> to vector<9x1xf32>
    %49 = tpu.reciprocal %48 {approx = true} : vector<9x1xf32> -> vector<9x1xf32>
    %50 = vector.broadcast %49 : vector<9x1xf32> to vector<9x128xf32>
    %51 = arith.mulf %46, %50 : vector<9x128xf32>
    %c0_23 = arith.constant 0 : index
    %c1 = arith.constant 1 : index
    %c0_24 = arith.constant 0 : index
    %c0_25 = arith.constant 0 : index
    %52 = vector.load %arg8[%c0_23, %c1, %c0_24, %c0_25] : memref<2x4x9x128xf32, #tpu.memory_space<vmem>>, vector<1x1x9x128xf32>
    %53 = vector.shape_cast %52 : vector<1x1x9x128xf32> to vector<9x128xf32>
    %54 = vector.shape_cast %51 : vector<9x128xf32> to vector<1x1x9x128xf32>
    tpu.vector_store %arg8[%c0_23, %c1, %c0_24, %c0_25], %54 {strides = array<i32>} : memref<2x4x9x128xf32, #tpu.memory_space<vmem>>, vector<1x1x9x128xf32>,
    %55 = arith.truncf %51 : vector<9x128xf32> to vector<9x128xbf16>
    %cst_26 = arith.constant dense<0.000000e+00> : vector<9x8xf32>
    %56 = tpu.matmul %55, %38, %cst_26 {dimension_numbers = #tpu.dot_dimension_numbers<[1], [0], [0], [1], [0, 0, 1, 1], [], []>} : vector<9x128xbf16>, vector<128x8xbf16>, vector<9x8xf32> -> vector<9x8xf32>
    %c0_27 = arith.constant 0 : index
    %c8 = arith.constant 8 : index
    %57 = vector.load %arg9[%c0_27, %c8] : memref<18x32xf32, #tpu.memory_space<vmem>>, vector<9x8xf32>
    tpu.vector_store %arg9[%c0_27, %c8], %56 {strides = array<i32>} : memref<18x32xf32, #tpu.memory_space<vmem>>, vector<9x8xf32>,
    %58 = vector.extract_strided_slice %11 {offsets = [0, 16], sizes = [9, 8], strides = [1, 1]} : vector<9x32xbf16> to vector<9x8xbf16>
    %59 = vector.extract_strided_slice %12 {offsets = [0, 16], sizes = [128, 8], strides = [1, 1]} : vector<128x32xbf16> to vector<128x8xbf16>
    %60 = vector.extract_strided_slice %13 {offsets = [0, 16], sizes = [128, 8], strides = [1, 1]} : vector<128x32xbf16> to vector<128x8xbf16>
    %cst_28 = arith.constant dense<0.000000e+00> : vector<9x128xf32>
    %61 = tpu.matmul %58, %59, %cst_28 {dimension_numbers = #tpu.dot_dimension_numbers<[1], [1], [0], [0], [0, 0, 1, 0], [], []>} : vector<9x8xbf16>, vector<128x8xbf16>, vector<9x128xf32> -> vector<9x128xf32>
    %cst_29 = arith.constant -1.000000e+30 : f32
    %62 = vector.broadcast %cst_29 : f32 to vector<9x128xf32>
    %63 = arith.select %10, %61, %62 : vector<9x128xi1>, vector<9x128xf32>
    %cst_30 = arith.constant dense<0xFF800000> : vector<9xf32>
    %64 = vector.multi_reduction <maximumf>, %63, %cst_30 [1] : vector<9x128xf32> to vector<9xf32>
    %65 = vector.shape_cast %64 : vector<9xf32> to vector<9x1xf32>
    %66 = vector.broadcast %65 : vector<9x1xf32> to vector<9x128xf32>
    %67 = arith.subf %63, %66 : vector<9x128xf32>
    %68 = math.exp %67 : vector<9x128xf32>
    %cst_31 = arith.constant dense<0.000000e+00> : vector<9xf32>
    %69 = vector.multi_reduction <add>, %68, %cst_31 [1] : vector<9x128xf32> to vector<9xf32>
    %70 = vector.shape_cast %69 : vector<9xf32> to vector<9x1xf32>
    %71 = tpu.reciprocal %70 {approx = true} : vector<9x1xf32> -> vector<9x1xf32>
    %72 = vector.broadcast %71 : vector<9x1xf32> to vector<9x128xf32>
    %73 = arith.mulf %68, %72 : vector<9x128xf32>
    %c0_32 = arith.constant 0 : index
    %c2 = arith.constant 2 : index
    %c0_33 = arith.constant 0 : index
    %c0_34 = arith.constant 0 : index
    %74 = vector.load %arg8[%c0_32, %c2, %c0_33, %c0_34] : memref<2x4x9x128xf32, #tpu.memory_space<vmem>>, vector<1x1x9x128xf32>
    %75 = vector.shape_cast %74 : vector<1x1x9x128xf32> to vector<9x128xf32>
    %76 = vector.shape_cast %73 : vector<9x128xf32> to vector<1x1x9x128xf32>
    tpu.vector_store %arg8[%c0_32, %c2, %c0_33, %c0_34], %76 {strides = array<i32>} : memref<2x4x9x128xf32, #tpu.memory_space<vmem>>, vector<1x1x9x128xf32>,
    %77 = arith.truncf %73 : vector<9x128xf32> to vector<9x128xbf16>
    %cst_35 = arith.constant dense<0.000000e+00> : vector<9x8xf32>
    %78 = tpu.matmul %77, %60, %cst_35 {dimension_numbers = #tpu.dot_dimension_numbers<[1], [0], [0], [1], [0, 0, 1, 1], [], []>} : vector<9x128xbf16>, vector<128x8xbf16>, vector<9x8xf32> -> vector<9x8xf32>
    %c0_36 = arith.constant 0 : index
    %c16 = arith.constant 16 : index
    %79 = vector.load %arg9[%c0_36, %c16] : memref<18x32xf32, #tpu.memory_space<vmem>>, vector<9x8xf32>
    tpu.vector_store %arg9[%c0_36, %c16], %78 {strides = array<i32>} : memref<18x32xf32, #tpu.memory_space<vmem>>, vector<9x8xf32>,
    %80 = vector.extract_strided_slice %11 {offsets = [0, 24], sizes = [9, 8], strides = [1, 1]} : vector<9x32xbf16> to vector<9x8xbf16>
    %81 = vector.extract_strided_slice %12 {offsets = [0, 24], sizes = [128, 8], strides = [1, 1]} : vector<128x32xbf16> to vector<128x8xbf16>
    %82 = vector.extract_strided_slice %13 {offsets = [0, 24], sizes = [128, 8], strides = [1, 1]} : vector<128x32xbf16> to vector<128x8xbf16>
    %cst_37 = arith.constant dense<0.000000e+00> : vector<9x128xf32>
    %83 = tpu.matmul %80, %81, %cst_37 {dimension_numbers = #tpu.dot_dimension_numbers<[1], [1], [0], [0], [0, 0, 1, 0], [], []>} : vector<9x8xbf16>, vector<128x8xbf16>, vector<9x128xf32> -> vector<9x128xf32>
    %cst_38 = arith.constant -1.000000e+30 : f32
    %84 = vector.broadcast %cst_38 : f32 to vector<9x128xf32>
    %85 = arith.select %10, %83, %84 : vector<9x128xi1>, vector<9x128xf32>
    %cst_39 = arith.constant dense<0xFF800000> : vector<9xf32>
    %86 = vector.multi_reduction <maximumf>, %85, %cst_39 [1] : vector<9x128xf32> to vector<9xf32>
    %87 = vector.shape_cast %86 : vector<9xf32> to vector<9x1xf32>
    %88 = vector.broadcast %87 : vector<9x1xf32> to vector<9x128xf32>
    %89 = arith.subf %85, %88 : vector<9x128xf32>
    %90 = math.exp %89 : vector<9x128xf32>
    %cst_40 = arith.constant dense<0.000000e+00> : vector<9xf32>
    %91 = vector.multi_reduction <add>, %90, %cst_40 [1] : vector<9x128xf32> to vector<9xf32>
    %92 = vector.shape_cast %91 : vector<9xf32> to vector<9x1xf32>
    %93 = tpu.reciprocal %92 {approx = true} : vector<9x1xf32> -> vector<9x1xf32>
    %94 = vector.broadcast %93 : vector<9x1xf32> to vector<9x128xf32>
    %95 = arith.mulf %90, %94 : vector<9x128xf32>
    %c0_41 = arith.constant 0 : index
    %c3 = arith.constant 3 : index
    %c0_42 = arith.constant 0 : index
    %c0_43 = arith.constant 0 : index
    %96 = vector.load %arg8[%c0_41, %c3, %c0_42, %c0_43] : memref<2x4x9x128xf32, #tpu.memory_space<vmem>>, vector<1x1x9x128xf32>
    %97 = vector.shape_cast %96 : vector<1x1x9x128xf32> to vector<9x128xf32>
    %98 = vector.shape_cast %95 : vector<9x128xf32> to vector<1x1x9x128xf32>
    tpu.vector_store %arg8[%c0_41, %c3, %c0_42, %c0_43], %98 {strides = array<i32>} : memref<2x4x9x128xf32, #tpu.memory_space<vmem>>, vector<1x1x9x128xf32>,
    %99 = arith.truncf %95 : vector<9x128xf32> to vector<9x128xbf16>
    %cst_44 = arith.constant dense<0.000000e+00> : vector<9x8xf32>
    %100 = tpu.matmul %99, %82, %cst_44 {dimension_numbers = #tpu.dot_dimension_numbers<[1], [0], [0], [1], [0, 0, 1, 1], [], []>} : vector<9x128xbf16>, vector<128x8xbf16>, vector<9x8xf32> -> vector<9x8xf32>
    %c0_45 = arith.constant 0 : index
    %c24 = arith.constant 24 : index
    %101 = vector.load %arg9[%c0_45, %c24] : memref<18x32xf32, #tpu.memory_space<vmem>>, vector<9x8xf32>
    tpu.vector_store %arg9[%c0_45, %c24], %100 {strides = array<i32>} : memref<18x32xf32, #tpu.memory_space<vmem>>, vector<9x8xf32>,
    %102 = vector.extract_strided_slice %6 {offsets = [9, 0], sizes = [9, 32], strides = [1, 1]} : vector<18x32xbf16> to vector<9x32xbf16>
    %103 = vector.extract_strided_slice %7 {offsets = [128, 0], sizes = [128, 32], strides = [1, 1]} : vector<256x64xbf16> to vector<128x32xbf16>
    %104 = vector.extract_strided_slice %7 {offsets = [128, 32], sizes = [128, 32], strides = [1, 1]} : vector<256x64xbf16> to vector<128x32xbf16>
    %105 = vector.extract_strided_slice %102 {offsets = [0, 0], sizes = [9, 8], strides = [1, 1]} : vector<9x32xbf16> to vector<9x8xbf16>
    %106 = vector.extract_strided_slice %103 {offsets = [0, 0], sizes = [128, 8], strides = [1, 1]} : vector<128x32xbf16> to vector<128x8xbf16>
    %107 = vector.extract_strided_slice %104 {offsets = [0, 0], sizes = [128, 8], strides = [1, 1]} : vector<128x32xbf16> to vector<128x8xbf16>
    %cst_46 = arith.constant dense<0.000000e+00> : vector<9x128xf32>
    %108 = tpu.matmul %105, %106, %cst_46 {dimension_numbers = #tpu.dot_dimension_numbers<[1], [1], [0], [0], [0, 0, 1, 0], [], []>} : vector<9x8xbf16>, vector<128x8xbf16>, vector<9x128xf32> -> vector<9x128xf32>
    %cst_47 = arith.constant -1.000000e+30 : f32
    %109 = vector.broadcast %cst_47 : f32 to vector<9x128xf32>
    %110 = arith.select %10, %108, %109 : vector<9x128xi1>, vector<9x128xf32>
    %cst_48 = arith.constant dense<0xFF800000> : vector<9xf32>
    %111 = vector.multi_reduction <maximumf>, %110, %cst_48 [1] : vector<9x128xf32> to vector<9xf32>
    %112 = vector.shape_cast %111 : vector<9xf32> to vector<9x1xf32>
    %113 = vector.broadcast %112 : vector<9x1xf32> to vector<9x128xf32>
    %114 = arith.subf %110, %113 : vector<9x128xf32>
    %115 = math.exp %114 : vector<9x128xf32>
    %cst_49 = arith.constant dense<0.000000e+00> : vector<9xf32>
    %116 = vector.multi_reduction <add>, %115, %cst_49 [1] : vector<9x128xf32> to vector<9xf32>
    %117 = vector.shape_cast %116 : vector<9xf32> to vector<9x1xf32>
    %118 = tpu.reciprocal %117 {approx = true} : vector<9x1xf32> -> vector<9x1xf32>
    %119 = vector.broadcast %118 : vector<9x1xf32> to vector<9x128xf32>
    %120 = arith.mulf %115, %119 : vector<9x128xf32>
    %c1_50 = arith.constant 1 : index
    %c0_51 = arith.constant 0 : index
    %c0_52 = arith.constant 0 : index
    %c0_53 = arith.constant 0 : index
    %121 = vector.load %arg8[%c1_50, %c0_51, %c0_52, %c0_53] : memref<2x4x9x128xf32, #tpu.memory_space<vmem>>, vector<1x1x9x128xf32>
    %122 = vector.shape_cast %121 : vector<1x1x9x128xf32> to vector<9x128xf32>
    %123 = vector.shape_cast %120 : vector<9x128xf32> to vector<1x1x9x128xf32>
    tpu.vector_store %arg8[%c1_50, %c0_51, %c0_52, %c0_53], %123 {strides = array<i32>} : memref<2x4x9x128xf32, #tpu.memory_space<vmem>>, vector<1x1x9x128xf32>,
    %124 = arith.truncf %120 : vector<9x128xf32> to vector<9x128xbf16>
    %cst_54 = arith.constant dense<0.000000e+00> : vector<9x8xf32>
    %125 = tpu.matmul %124, %107, %cst_54 {dimension_numbers = #tpu.dot_dimension_numbers<[1], [0], [0], [1], [0, 0, 1, 1], [], []>} : vector<9x128xbf16>, vector<128x8xbf16>, vector<9x8xf32> -> vector<9x8xf32>
    %c9 = arith.constant 9 : index
    %c0_55 = arith.constant 0 : index
    %126 = vector.load %arg9[%c9, %c0_55] : memref<18x32xf32, #tpu.memory_space<vmem>>, vector<9x8xf32>
    tpu.vector_store %arg9[%c9, %c0_55], %125 {strides = array<i32>} : memref<18x32xf32, #tpu.memory_space<vmem>>, vector<9x8xf32>,
    %127 = vector.extract_strided_slice %102 {offsets = [0, 8], sizes = [9, 8], strides = [1, 1]} : vector<9x32xbf16> to vector<9x8xbf16>
    %128 = vector.extract_strided_slice %103 {offsets = [0, 8], sizes = [128, 8], strides = [1, 1]} : vector<128x32xbf16> to vector<128x8xbf16>
    %129 = vector.extract_strided_slice %104 {offsets = [0, 8], sizes = [128, 8], strides = [1, 1]} : vector<128x32xbf16> to vector<128x8xbf16>
    %cst_56 = arith.constant dense<0.000000e+00> : vector<9x128xf32>
    %130 = tpu.matmul %127, %128, %cst_56 {dimension_numbers = #tpu.dot_dimension_numbers<[1], [1], [0], [0], [0, 0, 1, 0], [], []>} : vector<9x8xbf16>, vector<128x8xbf16>, vector<9x128xf32> -> vector<9x128xf32>
    %cst_57 = arith.constant -1.000000e+30 : f32
    %131 = vector.broadcast %cst_57 : f32 to vector<9x128xf32>
    %132 = arith.select %10, %130, %131 : vector<9x128xi1>, vector<9x128xf32>
    %cst_58 = arith.constant dense<0xFF800000> : vector<9xf32>
    %133 = vector.multi_reduction <maximumf>, %132, %cst_58 [1] : vector<9x128xf32> to vector<9xf32>
    %134 = vector.shape_cast %133 : vector<9xf32> to vector<9x1xf32>
    %135 = vector.broadcast %134 : vector<9x1xf32> to vector<9x128xf32>
    %136 = arith.subf %132, %135 : vector<9x128xf32>
    %137 = math.exp %136 : vector<9x128xf32>
    %cst_59 = arith.constant dense<0.000000e+00> : vector<9xf32>
    %138 = vector.multi_reduction <add>, %137, %cst_59 [1] : vector<9x128xf32> to vector<9xf32>
    %139 = vector.shape_cast %138 : vector<9xf32> to vector<9x1xf32>
    %140 = tpu.reciprocal %139 {approx = true} : vector<9x1xf32> -> vector<9x1xf32>
    %141 = vector.broadcast %140 : vector<9x1xf32> to vector<9x128xf32>
    %142 = arith.mulf %137, %141 : vector<9x128xf32>
    %c1_60 = arith.constant 1 : index
    %c1_61 = arith.constant 1 : index
    %c0_62 = arith.constant 0 : index
    %c0_63 = arith.constant 0 : index
    %143 = vector.load %arg8[%c1_60, %c1_61, %c0_62, %c0_63] : memref<2x4x9x128xf32, #tpu.memory_space<vmem>>, vector<1x1x9x128xf32>
    %144 = vector.shape_cast %143 : vector<1x1x9x128xf32> to vector<9x128xf32>
    %145 = vector.shape_cast %142 : vector<9x128xf32> to vector<1x1x9x128xf32>
    tpu.vector_store %arg8[%c1_60, %c1_61, %c0_62, %c0_63], %145 {strides = array<i32>} : memref<2x4x9x128xf32, #tpu.memory_space<vmem>>, vector<1x1x9x128xf32>,
    %146 = arith.truncf %142 : vector<9x128xf32> to vector<9x128xbf16>
    %cst_64 = arith.constant dense<0.000000e+00> : vector<9x8xf32>
    %147 = tpu.matmul %146, %129, %cst_64 {dimension_numbers = #tpu.dot_dimension_numbers<[1], [0], [0], [1], [0, 0, 1, 1], [], []>} : vector<9x128xbf16>, vector<128x8xbf16>, vector<9x8xf32> -> vector<9x8xf32>
    %c9_65 = arith.constant 9 : index
    %c8_66 = arith.constant 8 : index
    %148 = vector.load %arg9[%c9_65, %c8_66] : memref<18x32xf32, #tpu.memory_space<vmem>>, vector<9x8xf32>
    tpu.vector_store %arg9[%c9_65, %c8_66], %147 {strides = array<i32>} : memref<18x32xf32, #tpu.memory_space<vmem>>, vector<9x8xf32>,
    %149 = vector.extract_strided_slice %102 {offsets = [0, 16], sizes = [9, 8], strides = [1, 1]} : vector<9x32xbf16> to vector<9x8xbf16>
    %150 = vector.extract_strided_slice %103 {offsets = [0, 16], sizes = [128, 8], strides = [1, 1]} : vector<128x32xbf16> to vector<128x8xbf16>
    %151 = vector.extract_strided_slice %104 {offsets = [0, 16], sizes = [128, 8], strides = [1, 1]} : vector<128x32xbf16> to vector<128x8xbf16>
    %cst_67 = arith.constant dense<0.000000e+00> : vector<9x128xf32>
    %152 = tpu.matmul %149, %150, %cst_67 {dimension_numbers = #tpu.dot_dimension_numbers<[1], [1], [0], [0], [0, 0, 1, 0], [], []>} : vector<9x8xbf16>, vector<128x8xbf16>, vector<9x128xf32> -> vector<9x128xf32>
    %cst_68 = arith.constant -1.000000e+30 : f32
    %153 = vector.broadcast %cst_68 : f32 to vector<9x128xf32>
    %154 = arith.select %10, %152, %153 : vector<9x128xi1>, vector<9x128xf32>
    %cst_69 = arith.constant dense<0xFF800000> : vector<9xf32>
    %155 = vector.multi_reduction <maximumf>, %154, %cst_69 [1] : vector<9x128xf32> to vector<9xf32>
    %156 = vector.shape_cast %155 : vector<9xf32> to vector<9x1xf32>
    %157 = vector.broadcast %156 : vector<9x1xf32> to vector<9x128xf32>
    %158 = arith.subf %154, %157 : vector<9x128xf32>
    %159 = math.exp %158 : vector<9x128xf32>
    %cst_70 = arith.constant dense<0.000000e+00> : vector<9xf32>
    %160 = vector.multi_reduction <add>, %159, %cst_70 [1] : vector<9x128xf32> to vector<9xf32>
    %161 = vector.shape_cast %160 : vector<9xf32> to vector<9x1xf32>
    %162 = tpu.reciprocal %161 {approx = true} : vector<9x1xf32> -> vector<9x1xf32>
    %163 = vector.broadcast %162 : vector<9x1xf32> to vector<9x128xf32>
    %164 = arith.mulf %159, %163 : vector<9x128xf32>
    %c1_71 = arith.constant 1 : index
    %c2_72 = arith.constant 2 : index
    %c0_73 = arith.constant 0 : index
    %c0_74 = arith.constant 0 : index
    %165 = vector.load %arg8[%c1_71, %c2_72, %c0_73, %c0_74] : memref<2x4x9x128xf32, #tpu.memory_space<vmem>>, vector<1x1x9x128xf32>
    %166 = vector.shape_cast %165 : vector<1x1x9x128xf32> to vector<9x128xf32>
    %167 = vector.shape_cast %164 : vector<9x128xf32> to vector<1x1x9x128xf32>
    tpu.vector_store %arg8[%c1_71, %c2_72, %c0_73, %c0_74], %167 {strides = array<i32>} : memref<2x4x9x128xf32, #tpu.memory_space<vmem>>, vector<1x1x9x128xf32>,
    %168 = arith.truncf %164 : vector<9x128xf32> to vector<9x128xbf16>
    %cst_75 = arith.constant dense<0.000000e+00> : vector<9x8xf32>
    %169 = tpu.matmul %168, %151, %cst_75 {dimension_numbers = #tpu.dot_dimension_numbers<[1], [0], [0], [1], [0, 0, 1, 1], [], []>} : vector<9x128xbf16>, vector<128x8xbf16>, vector<9x8xf32> -> vector<9x8xf32>
    %c9_76 = arith.constant 9 : index
    %c16_77 = arith.constant 16 : index
    %170 = vector.load %arg9[%c9_76, %c16_77] : memref<18x32xf32, #tpu.memory_space<vmem>>, vector<9x8xf32>
    tpu.vector_store %arg9[%c9_76, %c16_77], %169 {strides = array<i32>} : memref<18x32xf32, #tpu.memory_space<vmem>>, vector<9x8xf32>,
    %171 = vector.extract_strided_slice %102 {offsets = [0, 24], sizes = [9, 8], strides = [1, 1]} : vector<9x32xbf16> to vector<9x8xbf16>
    %172 = vector.extract_strided_slice %103 {offsets = [0, 24], sizes = [128, 8], strides = [1, 1]} : vector<128x32xbf16> to vector<128x8xbf16>
    %173 = vector.extract_strided_slice %104 {offsets = [0, 24], sizes = [128, 8], strides = [1, 1]} : vector<128x32xbf16> to vector<128x8xbf16>
    %cst_78 = arith.constant dense<0.000000e+00> : vector<9x128xf32>
    %174 = tpu.matmul %171, %172, %cst_78 {dimension_numbers = #tpu.dot_dimension_numbers<[1], [1], [0], [0], [0, 0, 1, 0], [], []>} : vector<9x8xbf16>, vector<128x8xbf16>, vector<9x128xf32> -> vector<9x128xf32>
    %cst_79 = arith.constant -1.000000e+30 : f32
    %175 = vector.broadcast %cst_79 : f32 to vector<9x128xf32>
    %176 = arith.select %10, %174, %175 : vector<9x128xi1>, vector<9x128xf32>
    %cst_80 = arith.constant dense<0xFF800000> : vector<9xf32>
    %177 = vector.multi_reduction <maximumf>, %176, %cst_80 [1] : vector<9x128xf32> to vector<9xf32>
    %178 = vector.shape_cast %177 : vector<9xf32> to vector<9x1xf32>
    %179 = vector.broadcast %178 : vector<9x1xf32> to vector<9x128xf32>
    %180 = arith.subf %176, %179 : vector<9x128xf32>
    %181 = math.exp %180 : vector<9x128xf32>
    %cst_81 = arith.constant dense<0.000000e+00> : vector<9xf32>
    %182 = vector.multi_reduction <add>, %181, %cst_81 [1] : vector<9x128xf32> to vector<9xf32>
    %183 = vector.shape_cast %182 : vector<9xf32> to vector<9x1xf32>
    %184 = tpu.reciprocal %183 {approx = true} : vector<9x1xf32> -> vector<9x1xf32>
    %185 = vector.broadcast %184 : vector<9x1xf32> to vector<9x128xf32>
    %186 = arith.mulf %181, %185 : vector<9x128xf32>
    %c1_82 = arith.constant 1 : index
    %c3_83 = arith.constant 3 : index
    %c0_84 = arith.constant 0 : index
    %c0_85 = arith.constant 0 : index
    %187 = vector.load %arg8[%c1_82, %c3_83, %c0_84, %c0_85] : memref<2x4x9x128xf32, #tpu.memory_space<vmem>>, vector<1x1x9x128xf32>
    %188 = vector.shape_cast %187 : vector<1x1x9x128xf32> to vector<9x128xf32>
    %189 = vector.shape_cast %186 : vector<9x128xf32> to vector<1x1x9x128xf32>
    tpu.vector_store %arg8[%c1_82, %c3_83, %c0_84, %c0_85], %189 {strides = array<i32>} : memref<2x4x9x128xf32, #tpu.memory_space<vmem>>, vector<1x1x9x128xf32>,
    %190 = arith.truncf %186 : vector<9x128xf32> to vector<9x128xbf16>
    %cst_86 = arith.constant dense<0.000000e+00> : vector<9x8xf32>
    %191 = tpu.matmul %190, %173, %cst_86 {dimension_numbers = #tpu.dot_dimension_numbers<[1], [0], [0], [1], [0, 0, 1, 1], [], []>} : vector<9x128xbf16>, vector<128x8xbf16>, vector<9x8xf32> -> vector<9x8xf32>
    %c9_87 = arith.constant 9 : index
    %c24_88 = arith.constant 24 : index
    %192 = vector.load %arg9[%c9_87, %c24_88] : memref<18x32xf32, #tpu.memory_space<vmem>>, vector<9x8xf32>
    tpu.vector_store %arg9[%c9_87, %c24_88], %191 {strides = array<i32>} : memref<18x32xf32, #tpu.memory_space<vmem>>, vector<9x8xf32>,
    %c0_89 = arith.constant 0 : index
    %c0_90 = arith.constant 0 : index
    %193 = vector.load %arg9[%c0_89, %c0_90] : memref<18x32xf32, #tpu.memory_space<vmem>>, vector<18x32xf32>
    %194 = arith.truncf %193 : vector<18x32xf32> to vector<18x32xbf16>
    %c0_91 = arith.constant 0 : index
    %c0_92 = arith.constant 0 : index
    %195 = vector.load %arg5[%c0_91, %c0_92] : memref<32x32xbf16, #tpu.memory_space<vmem>>, vector<32x32xbf16>
    %cst_93 = arith.constant dense<0.000000e+00> : vector<18x32xf32>
    %196 = tpu.matmul %194, %195, %cst_93 {dimension_numbers = #tpu.dot_dimension_numbers<[1], [0], [0], [1], [0, 0, 1, 1], [], []>} : vector<18x32xbf16>, vector<32x32xbf16>, vector<18x32xf32> -> vector<18x32xf32>
    %c0_94 = arith.constant 0 : index
    %c0_95 = arith.constant 0 : index
    %197 = vector.load %arg6[%c0_94, %c0_95] : memref<1x32xf32, #tpu.memory_space<vmem>>, vector<1x32xf32>
    %198 = vector.broadcast %197 : vector<1x32xf32> to vector<18x32xf32>
    %199 = arith.addf %196, %198 : vector<18x32xf32>
    %c0_96 = arith.constant 0 : index
    %c0_97 = arith.constant 0 : index
    %200 = vector.load %arg7[%c0_96, %c0_97] : memref<18x32xf32, #tpu.memory_space<vmem>>, vector<18x32xf32>
    tpu.vector_store %arg7[%c0_96, %c0_97], %199 {strides = array<i32>} : memref<18x32xf32, #tpu.memory_space<vmem>>, vector<18x32xf32>,
    return
  }
  func.func @transform_0(%arg0: i32) -> (i32, i32) {
    %c0_i32 = arith.constant 0 : i32
    %c0_i32_0 = arith.constant 0 : i32
    return %arg0, %c0_i32 : i32, i32
  }
  func.func @transform_1(%arg0: i32) -> (i32, i32) {
    %c0_i32 = arith.constant 0 : i32
    %c0_i32_0 = arith.constant 0 : i32
    return %arg0, %c0_i32 : i32, i32
  }
  func.func @transform_2(%arg0: i32) -> (i32, i32) {
    %c0_i32 = arith.constant 0 : i32
    %c0_i32_0 = arith.constant 0 : i32
    %c0_i32_1 = arith.constant 0 : i32
    return %c0_i32, %c0_i32_0 : i32, i32
  }
  func.func @transform_3(%arg0: i32) -> (i32, i32) {
    %c0_i32 = arith.constant 0 : i32
    %c0_i32_0 = arith.constant 0 : i32
    %c0_i32_1 = arith.constant 0 : i32
    return %c0_i32, %c0_i32_0 : i32, i32
  }
  func.func @transform_4(%arg0: i32) -> (i32, i32) {
    %c0_i32 = arith.constant 0 : i32
    %c0_i32_0 = arith.constant 0 : i32
    %c0_i32_1 = arith.constant 0 : i32
    return %c0_i32, %c0_i32_0 : i32, i32
  }
  func.func @transform_5(%arg0: i32) -> (i32, i32) {
    %c0_i32 = arith.constant 0 : i32
    %c0_i32_0 = arith.constant 0 : i32
    %c0_i32_1 = arith.constant 0 : i32
    return %c0_i32, %c0_i32_0 : i32, i32
  }
  func.func @transform_6(%arg0: i32) -> (i32, i32) {
    %c0_i32 = arith.constant 0 : i32
    %c0_i32_0 = arith.constant 0 : i32
    return %arg0, %c0_i32 : i32, i32
  }
  func.func @transform_7(%arg0: i32) -> (i32, i32, i32, i32) {
    %c0_i32 = arith.constant 0 : i32
    %c0_i32_0 = arith.constant 0 : i32
    %c0_i32_1 = arith.constant 0 : i32
    %c0_i32_2 = arith.constant 0 : i32
    return %arg0, %c0_i32, %c0_i32_0, %c0_i32_1 : i32, i32, i32, i32
  }
}

</mosaic_0001>

<llo_original>
// kernel: tpu_custom_call.1
$region0: #{tpu_custom_call.1}
  #allocation0 [shape = 'u32[]', space=smem, size = 0x4, offset = 0x4, fixed_abs, tag = 'smem constant byte address 0x4 - core index']
  #allocation1 [shape = 'u32[72,128]{1,0:T(1,128)}', space=vmem, size = 0x9000, scoped, tag = 'internal scratch']
  #allocation2 [shape = 'f32[18,32]{1,0:T(8,128)}', space=vmem, size = 0x3000, scoped, tag = 'scratch operand']
  %s0 = inlined_call_operand.vmem [shape: bf16[18,32], index: 0, kind: input, shape index: {}]
  %s1 = inlined_call_operand.vmem [shape: bf16[256,32], index: 1, kind: input, shape index: {}]
  %s2 = inlined_call_operand.vmem [shape: bf16[32,32], index: 2, kind: input, shape index: {}]
  %s3 = inlined_call_operand.vmem [shape: bf16[32,64], index: 3, kind: input, shape index: {}]
  %s4 = inlined_call_operand.vmem [shape: bf16[32,32], index: 4, kind: input, shape index: {}]
  %s5 = inlined_call_operand.vmem [shape: f32[1,32], index: 5, kind: input, shape index: {}]
  %s6 = inlined_call_operand.hbm [shape: f32[18,32], index: 6, kind: output, shape index: {0}]
  %s7 = inlined_call_operand.vmem [shape: f32[2,4,9,128], index: 7, kind: output, shape index: {1}]
  %8 = xla_tuple %s6, %s7
  %s9 = sld [smem:[#allocation0]]
  $region42: #{tpu_custom_call.1} parent=0
    _
  %s11 = ssub.s32 1, %s9
  %s12 = scalar_select 0, %s11, %s9
  $region1: #{tpu_custom_call.1} parent=0
    #allocation3 [shape = 'u8[12288]{0}', space=vmem, size = 0x3000, scoped, tag = 'output window, operand 0, single buffered']
    #allocation4 [shape = 's32[1]{0}', space=sflag, size = 0x4, scoped, tag = 'scoped memory for tpu_custom_call.1']
    %13 = vsyncpa [#allocation4], 0
    // Predicated region
    $region2: #{tpu_custom_call.1} parent=1 // pred_check
      _
    $region3: #{tpu_custom_call.1} parent=1 // pred_check_branch
      %15 = sbr.rel (0) target = $region5
    $region4: #{tpu_custom_call.1} parent=1 // pred_region
      _
    $region5: #{tpu_custom_call.1} parent=1 // pred_fallthru
      _
    // Predicated region
    $region6: #{tpu_custom_call.1} parent=1 // pred_check
      _
    $region7: #{tpu_custom_call.1} parent=1 // pred_check_branch
      %17 = sbr.rel (0) target = $region9
    $region8: #{tpu_custom_call.1} parent=1 // pred_region
      _
    $region9: #{tpu_custom_call.1} parent=1 // pred_fallthru
      _
    // Predicated region
    $region10: #{tpu_custom_call.1} parent=1 // pred_check
      _
    $region11: #{tpu_custom_call.1} parent=1 // pred_check_branch
      %19 = sbr.rel (0) target = $region13
    $region12: #{tpu_custom_call.1} parent=1 // pred_region
      _
    $region13: #{tpu_custom_call.1} parent=1 // pred_fallthru
      _
    // Predicated region
    $region14: #{tpu_custom_call.1} parent=1 // pred_check
      _
    $region15: #{tpu_custom_call.1} parent=1 // pred_check_branch
      %21 = sbr.rel (0) target = $region17
    $region16: #{tpu_custom_call.1} parent=1 // pred_region
      _
    $region17: #{tpu_custom_call.1} parent=1 // pred_fallthru
      _
    // Predicated region
    $region18: #{tpu_custom_call.1} parent=1 // pred_check
      _
    $region19: #{tpu_custom_call.1} parent=1 // pred_check_branch
      %23 = sbr.rel (0) target = $region21
    $region20: #{tpu_custom_call.1} parent=1 // pred_region
      _
    $region21: #{tpu_custom_call.1} parent=1 // pred_fallthru
      _
    // Predicated region
    $region22: #{tpu_custom_call.1} parent=1 // pred_check
      _
    $region23: #{tpu_custom_call.1} parent=1 // pred_check_branch
      %25 = sbr.rel (0) target = $region25
    $region24: #{tpu_custom_call.1} parent=1 // pred_region
      _
    $region25: #{tpu_custom_call.1} parent=1 // pred_fallthru
      _
    %v27 = vld [vmem:[%s0] sm:$0xf]
    %v28 = vld [vmem:[%s0 + $0x4] sm:$0xf]
    %v29 = vld [vmem:[%s0 + $0x8] sm:$0x1]
    %v30 = vld [vmem:[%s2] sm:$0xf]
    %v31 = vld [vmem:[%s2 + $0x4] sm:$0xf]
    %v32 = vld [vmem:[%s2 + $0x8] sm:$0xf]
    %v33 = vld [vmem:[%s2 + $0xc] sm:$0xf]
    %v37 = vunpack.c.l.b16 %v27
    %v38 = vunpack.c.l.b16 %v28
    %v39 = vunpack.c.l.b16 %v29
    %v40 = vpack.c.b16 %v38, %v37
    %v41 = vpack.c.b16 %v39, %v39
    %v46 = vunpack.c.l.b16 %v30
    %v47 = vunpack.c.l.b16 %v31
    %v48 = vunpack.c.l.b16 %v32
    %v49 = vunpack.c.l.b16 %v33
    %v50 = vpack.c.b16 %v47, %v46
    %v51 = vpack.c.b16 %v49, %v48
    %vm54 = vcmask 261120
    %v56 = vsel %vm54, %v40, 0
    %v59 = vsel %vm54, %v41, 0
    %61 = vmatpush.bf16.msra.mxu0 0
    %62 = vmatpush.bf16.msra.mxu0 0
    %63 = vmatpush.bf16.msra.mxu0 0
    %64 = vmatpush.bf16.msra.mxu0 0
    %65 = vmatpush.bf16.msra.mxu0 0
    %66 = vmatpush.bf16.msra.mxu0 0
    %67 = vmatpush.bf16.msra.mxu0 %v51
    %68 = vmatpush.bf16.msra.mxu0 %v50
    %69 = vmatmul.bf16.gmra.mxu0 %v56
    %v70 = vpop.f32.mrf.mxu0
    %v71 = vadd.f32 0.0, %v70
    %v72 = vpop.f32.mrf.mxu0
    %v73 = vadd.f32 0.0, %v72
    %74 = vmatmul.bf16.gmra.mxu0 %v59
    %v75 = vpop.f32.mrf.mxu0
    %v76 = vadd.f32 0.0, %v75
    %v77 = vpop.f32.mrf.mxu0
    %78 = vdwg.mxu0
    %v79 = vld [vmem:[%s1] sm:$0xf]
    %v80 = vld [vmem:[%s1 + $0x4] sm:$0xf]
    %v81 = vld [vmem:[%s1 + $0x8] sm:$0xf]
    %v82 = vld [vmem:[%s1 + $0xc] sm:$0xf]
    %v83 = vld [vmem:[%s1 + $0x10] sm:$0xf]
    %v84 = vld [vmem:[%s1 + $0x14] sm:$0xf]
    %v85 = vld [vmem:[%s1 + $0x18] sm:$0xf]
    %v86 = vld [vmem:[%s1 + $0x1c] sm:$0xf]
    %v87 = vld [vmem:[%s1 + $0x20] sm:$0xf]
    %v88 = vld [vmem:[%s1 + $0x24] sm:$0xf]
    %v89 = vld [vmem:[%s1 + $0x28] sm:$0xf]
    %v90 = vld [vmem:[%s1 + $0x2c] sm:$0xf]
    %v91 = vld [vmem:[%s1 + $0x30] sm:$0xf]
    %v92 = vld [vmem:[%s1 + $0x34] sm:$0xf]
    %v93 = vld [vmem:[%s1 + $0x38] sm:$0xf]
    %v94 = vld [vmem:[%s1 + $0x3c] sm:$0xf]
    %v95 = vld [vmem:[%s1 + $0x40] sm:$0xf]
    %v96 = vld [vmem:[%s1 + $0x44] sm:$0xf]
    %v97 = vld [vmem:[%s1 + $0x48] sm:$0xf]
    %v98 = vld [vmem:[%s1 + $0x4c] sm:$0xf]
    %v99 = vld [vmem:[%s1 + $0x50] sm:$0xf]
    %v100 = vld [vmem:[%s1 + $0x54] sm:$0xf]
    %v101 = vld [vmem:[%s1 + $0x58] sm:$0xf]
    %v102 = vld [vmem:[%s1 + $0x5c] sm:$0xf]
    %v103 = vld [vmem:[%s1 + $0x60] sm:$0xf]
    %v104 = vld [vmem:[%s1 + $0x64] sm:$0xf]
    %v105 = vld [vmem:[%s1 + $0x68] sm:$0xf]
    %v106 = vld [vmem:[%s1 + $0x6c] sm:$0xf]
    %v107 = vld [vmem:[%s1 + $0x70] sm:$0xf]
    %v108 = vld [vmem:[%s1 + $0x74] sm:$0xf]
    %v109 = vld [vmem:[%s1 + $0x78] sm:$0xf]
    %v110 = vld [vmem:[%s1 + $0x7c] sm:$0xf]
    %v111 = vld [vmem:[%s3] sm:$0xf]
    %v112 = vld [vmem:[%s3 + $0x4] sm:$0xf]
    %v113 = vld [vmem:[%s3 + $0x8] sm:$0xf]
    %v114 = vld [vmem:[%s3 + $0xc] sm:$0xf]
    %v147 = vunpack.c.l.b16 %v79
    %v148 = vunpack.c.l.b16 %v80
    %v149 = vunpack.c.l.b16 %v81
    %v150 = vunpack.c.l.b16 %v82
    %v151 = vunpack.c.l.b16 %v83
    %v152 = vunpack.c.l.b16 %v84
    %v153 = vunpack.c.l.b16 %v85
    %v154 = vunpack.c.l.b16 %v86
    %v155 = vunpack.c.l.b16 %v87
    %v156 = vunpack.c.l.b16 %v88
    %v157 = vunpack.c.l.b16 %v89
    %v158 = vunpack.c.l.b16 %v90
    %v159 = vunpack.c.l.b16 %v91
    %v160 = vunpack.c.l.b16 %v92
    %v161 = vunpack.c.l.b16 %v93
    %v162 = vunpack.c.l.b16 %v94
    %v163 = vunpack.c.l.b16 %v95
    %v164 = vunpack.c.l.b16 %v96
    %v165 = vunpack.c.l.b16 %v97
    %v166 = vunpack.c.l.b16 %v98
    %v167 = vunpack.c.l.b16 %v99
    %v168 = vunpack.c.l.b16 %v100
    %v169 = vunpack.c.l.b16 %v101
    %v170 = vunpack.c.l.b16 %v102
    %v171 = vunpack.c.l.b16 %v103
    %v172 = vunpack.c.l.b16 %v104
    %v173 = vunpack.c.l.b16 %v105
    %v174 = vunpack.c.l.b16 %v106
    %v175 = vunpack.c.l.b16 %v107
    %v176 = vunpack.c.l.b16 %v108
    %v177 = vunpack.c.l.b16 %v109
    %v178 = vunpack.c.l.b16 %v110
    %v179 = vpack.c.b16 %v148, %v147
    %v180 = vpack.c.b16 %v150, %v149
    %v181 = vpack.c.b16 %v152, %v151
    %v182 = vpack.c.b16 %v154, %v153
    %v183 = vpack.c.b16 %v156, %v155
    %v184 = vpack.c.b16 %v158, %v157
    %v185 = vpack.c.b16 %v160, %v159
    %v186 = vpack.c.b16 %v162, %v161
    %v187 = vpack.c.b16 %v164, %v163
    %v188 = vpack.c.b16 %v166, %v165
    %v189 = vpack.c.b16 %v168, %v167
    %v190 = vpack.c.b16 %v170, %v169
    %v191 = vpack.c.b16 %v172, %v171
    %v192 = vpack.c.b16 %v174, %v173
    %v193 = vpack.c.b16 %v176, %v175
    %v194 = vpack.c.b16 %v178, %v177
    %v199 = vunpack.c.l.b16 %v111
    %v200 = vunpack.c.l.b16 %v112
    %v201 = vunpack.c.l.b16 %v113
    %v202 = vunpack.c.l.b16 %v114
    %v203 = vpack.c.b16 %v200, %v199
    %v204 = vpack.c.b16 %v202, %v201
    %v208 = vsel %vm54, %v179, 0
    %v211 = vsel %vm54, %v180, 0
    %v214 = vsel %vm54, %v181, 0
    %v217 = vsel %vm54, %v182, 0
    %v220 = vsel %vm54, %v183, 0
    %v223 = vsel %vm54, %v184, 0
    %v226 = vsel %vm54, %v185, 0
    %v229 = vsel %vm54, %v186, 0
    %v232 = vsel %vm54, %v187, 0
    %v235 = vsel %vm54, %v188, 0
    %v238 = vsel %vm54, %v189, 0
    %v241 = vsel %vm54, %v190, 0
    %v244 = vsel %vm54, %v191, 0
    %v247 = vsel %vm54, %v192, 0
    %v250 = vsel %vm54, %v193, 0
    %v253 = vsel %vm54, %v194, 0
    %255 = vmatpush.bf16.msra.mxu0 0
    %256 = vmatpush.bf16.msra.mxu0 0
    %257 = vmatpush.bf16.msra.mxu0 0
    %258 = vmatpush.bf16.msra.mxu0 0
    %259 = vmatpush.bf16.msra.mxu0 0
    %260 = vmatpush.bf16.msra.mxu0 0
    %261 = vmatpush.bf16.msra.mxu0 %v204
    %262 = vmatpush.bf16.msra.mxu0 %v203
    %263 = vmatmul.bf16.gmra.mxu0 %v208
    %v264 = vpop.f32.mrf.mxu0
    %v265 = vadd.f32 0.0, %v264
    %v266 = vpop.f32.mrf.mxu0
    %v267 = vadd.f32 0.0, %v266
    %268 = vmatmul.bf16.gmra.mxu0 %v211
    %v269 = vpop.f32.mrf.mxu0
    %v270 = vadd.f32 0.0, %v269
    %v271 = vpop.f32.mrf.mxu0
    %v272 = vadd.f32 0.0, %v271
    %273 = vmatmul.bf16.gmra.mxu0 %v214
    %v274 = vpop.f32.mrf.mxu0
    %v275 = vadd.f32 0.0, %v274
    %v276 = vpop.f32.mrf.mxu0
    %v277 = vadd.f32 0.0, %v276
    %278 = vmatmul.bf16.gmra.mxu0 %v217
    %v279 = vpop.f32.mrf.mxu0
    %v280 = vadd.f32 0.0, %v279
    %v281 = vpop.f32.mrf.mxu0
    %v282 = vadd.f32 0.0, %v281
    %283 = vmatmul.bf16.gmra.mxu0 %v220
    %v284 = vpop.f32.mrf.mxu0
    %v285 = vadd.f32 0.0, %v284
    %v286 = vpop.f32.mrf.mxu0
    %v287 = vadd.f32 0.0, %v286
    %288 = vmatmul.bf16.gmra.mxu0 %v223
    %v289 = vpop.f32.mrf.mxu0
    %v290 = vadd.f32 0.0, %v289
    %v291 = vpop.f32.mrf.mxu0
    %v292 = vadd.f32 0.0, %v291
    %293 = vmatmul.bf16.gmra.mxu0 %v226
    %v294 = vpop.f32.mrf.mxu0
    %v295 = vadd.f32 0.0, %v294
    %v296 = vpop.f32.mrf.mxu0
    %v297 = vadd.f32 0.0, %v296
    %298 = vmatmul.bf16.gmra.mxu0 %v229
    %v299 = vpop.f32.mrf.mxu0
    %v300 = vadd.f32 0.0, %v299
    %v301 = vpop.f32.mrf.mxu0
    %v302 = vadd.f32 0.0, %v301
    %303 = vmatmul.bf16.gmra.mxu0 %v232
    %v304 = vpop.f32.mrf.mxu0
    %v305 = vadd.f32 0.0, %v304
    %v306 = vpop.f32.mrf.mxu0
    %v307 = vadd.f32 0.0, %v306
    %308 = vmatmul.bf16.gmra.mxu0 %v235
    %v309 = vpop.f32.mrf.mxu0
    %v310 = vadd.f32 0.0, %v309
    %v311 = vpop.f32.mrf.mxu0
    %v312 = vadd.f32 0.0, %v311
    %313 = vmatmul.bf16.gmra.mxu0 %v238
    %v314 = vpop.f32.mrf.mxu0
    %v315 = vadd.f32 0.0, %v314
    %v316 = vpop.f32.mrf.mxu0
    %v317 = vadd.f32 0.0, %v316
    %318 = vmatmul.bf16.gmra.mxu0 %v241
    %v319 = vpop.f32.mrf.mxu0
    %v320 = vadd.f32 0.0, %v319
    %v321 = vpop.f32.mrf.mxu0
    %v322 = vadd.f32 0.0, %v321
    %323 = vmatmul.bf16.gmra.mxu0 %v244
    %v324 = vpop.f32.mrf.mxu0
    %v325 = vadd.f32 0.0, %v324
    %v326 = vpop.f32.mrf.mxu0
    %v327 = vadd.f32 0.0, %v326
    %328 = vmatmul.bf16.gmra.mxu0 %v247
    %v329 = vpop.f32.mrf.mxu0
    %v330 = vadd.f32 0.0, %v329
    %v331 = vpop.f32.mrf.mxu0
    %v332 = vadd.f32 0.0, %v331
    %333 = vmatmul.bf16.gmra.mxu0 %v250
    %v334 = vpop.f32.mrf.mxu0
    %v335 = vadd.f32 0.0, %v334
    %v336 = vpop.f32.mrf.mxu0
    %v337 = vadd.f32 0.0, %v336
    %338 = vmatmul.bf16.gmra.mxu0 %v253
    %v339 = vpop.f32.mrf.mxu0
    %v340 = vadd.f32 0.0, %v339
    %v341 = vpop.f32.mrf.mxu0
    %v342 = vadd.f32 0.0, %v341
    %343 = vdwg.mxu0
    %v344 = vpack.c.bf16 %v71, %v71
    %v345 = vpack.c.bf16 %v73, %v73
    %v346 = vpack.c.bf16 %v76, %v76
    %v347 = vpack.c.bf16 %v265, %v265
    %v348 = vpack.c.bf16 %v267, %v267
    %v349 = vpack.c.bf16 %v270, %v270
    %v350 = vpack.c.bf16 %v272, %v272
    %v351 = vpack.c.bf16 %v275, %v275
    %v352 = vpack.c.bf16 %v277, %v277
    %v353 = vpack.c.bf16 %v280, %v280
    %v354 = vpack.c.bf16 %v282, %v282
    %v355 = vpack.c.bf16 %v285, %v285
    %v356 = vpack.c.bf16 %v287, %v287
    %v357 = vpack.c.bf16 %v290, %v290
    %v358 = vpack.c.bf16 %v292, %v292
    %v359 = vpack.c.bf16 %v295, %v295
    %v360 = vpack.c.bf16 %v297, %v297
    %v361 = vpack.c.bf16 %v300, %v300
    %v362 = vpack.c.bf16 %v302, %v302
    %v363 = vpack.c.bf16 %v305, %v305
    %v364 = vpack.c.bf16 %v307, %v307
    %v365 = vpack.c.bf16 %v310, %v310
    %v366 = vpack.c.bf16 %v312, %v312
    %v367 = vpack.c.bf16 %v315, %v315
    %v368 = vpack.c.bf16 %v317, %v317
    %v369 = vpack.c.bf16 %v320, %v320
    %v370 = vpack.c.bf16 %v322, %v322
    %v371 = vpack.c.bf16 %v325, %v325
    %v372 = vpack.c.bf16 %v327, %v327
    %v373 = vpack.c.bf16 %v330, %v330
    %v374 = vpack.c.bf16 %v332, %v332
    %v375 = vpack.c.bf16 %v335, %v335
    %v376 = vpack.c.bf16 %v337, %v337
    %v377 = vpack.c.bf16 %v340, %v340
    %v378 = vpack.c.bf16 %v342, %v342
    %v379 = vlaneseq
    %v380 = vand.u32 %v379, 127
    %vm381 = vcmp.lt.s32.totalorder %v380, 15
    %v384 = vunpack.c.l.b16 %v344
    %v385 = vunpack.c.l.b16 %v345
    %v386 = vpack.c.b16 %v385, %v384
    %v403 = vunpack.c.l.b16 %v347
    %v404 = vunpack.c.l.b16 %v348
    %v405 = vunpack.c.l.b16 %v349
    %v406 = vunpack.c.l.b16 %v350
    %v407 = vunpack.c.l.b16 %v351
    %v408 = vunpack.c.l.b16 %v352
    %v409 = vunpack.c.l.b16 %v353
    %v410 = vunpack.c.l.b16 %v354
    %v411 = vunpack.c.l.b16 %v355
    %v412 = vunpack.c.l.b16 %v356
    %v413 = vunpack.c.l.b16 %v357
    %v414 = vunpack.c.l.b16 %v358
    %v415 = vunpack.c.l.b16 %v359
    %v416 = vunpack.c.l.b16 %v360
    %v417 = vunpack.c.l.b16 %v361
    %v418 = vunpack.c.l.b16 %v362
    %v419 = vpack.c.b16 %v404, %v403
    %v420 = vpack.c.b16 %v406, %v405
    %v421 = vpack.c.b16 %v408, %v407
    %v422 = vpack.c.b16 %v410, %v409
    %v423 = vpack.c.b16 %v412, %v411
    %v424 = vpack.c.b16 %v414, %v413
    %v425 = vpack.c.b16 %v416, %v415
    %v426 = vpack.c.b16 %v418, %v417
    %vm427 = vcmask 64512
    %v429 = vsel %vm427, %v386, 0
    %v432 = vsel %vm427, %v419, 0
    %v435 = vsel %vm427, %v420, 0
    %v438 = vsel %vm427, %v421, 0
    %v441 = vsel %vm427, %v422, 0
    %v444 = vsel %vm427, %v423, 0
    %v447 = vsel %vm427, %v424, 0
    %v450 = vsel %vm427, %v425, 0
    %v453 = vsel %vm427, %v426, 0
    %455 = vmatpush.bf16.xpose.msra.mxu0 %v453
    %456 = vmatpush.bf16.xpose.msra.mxu0 %v450
    %457 = vmatpush.bf16.xpose.msra.mxu0 %v447
    %458 = vmatpush.bf16.xpose.msra.mxu0 %v444
    %459 = vmatpush.bf16.xpose.msra.mxu0 %v441
    %460 = vmatpush.bf16.xpose.msra.mxu0 %v438
    %461 = vmatpush.bf16.xpose.msra.mxu0 %v435
    %462 = vmatpush.bf16.xpose.msra.mxu0 %v432
    %463 = vmatmul.bf16.gmra.mxu0 %v429
    %v464 = vpop.f32.mrf.mxu0
    %v465 = vadd.f32 0.0, %v464
    %v466 = vpop.f32.mrf.mxu0
    %v467 = vadd.f32 0.0, %v466
    %468 = vdwg.mxu0
    %v469 = vsel %vm381, %v465, -1e+30
    %v470 = vsel %vm381, %v467, -1e+30
    %471 = vmax.xlane.f32.xlu0 %v469
    %v472 = vpop.xlane.xlu0 %471
    %vm473 = vcmask 1040384
    %v474 = vsel %vm473, %v470, -inf
    %475 = vmax.xlane.f32.xlu0 %v474
    %v476 = vpop.xlane.xlu0 %475
    %v477 = vsub.f32 %v469, %v472
    %v478 = vsub.f32 %v470, %v476
    %v479 = vmul.f32 %v477, 1.442695
    %v480 = vpow.pop %v479
    %v481 = vmul.f32 %v478, 1.442695
    %v482 = vpow.pop %v481
    %483 = vadd.xlane.f32.xlu0 %v480
    %v484 = vpop.xlane.xlu0 %483
    %v485 = vsel %vm473, %v482, 0.0
    %486 = vadd.xlane.f32.xlu0 %v485
    %v487 = vpop.xlane.xlu0 %486
    %v488 = vrcp.pop %v484
    %v489 = vrcp.pop %v487
    %v490 = vmul.f32 %v480, %v488
    %v491 = vmul.f32 %v482, %v489
    %492 = vst [vmem:[%s7] sm:$0xff] %v490
    %493 = vst [vmem:[%s7 + $0x8] sm:$0x1] %v491
    %v494 = vpack.c.bf16 %v491, %v490
    %495 = vrot.lane.b32.xlu0 %v419, 96
    %v496 = vpop.permute.xlu0 %495
    %497 = vrot.lane.b32.xlu0 %v420, 96
    %v498 = vpop.permute.xlu0 %497
    %499 = vrot.lane.b32.xlu0 %v421, 96
    %v500 = vpop.permute.xlu0 %499
    %501 = vrot.lane.b32.xlu0 %v422, 96
    %v502 = vpop.permute.xlu0 %501
    %503 = vrot.lane.b32.xlu0 %v423, 96
    %v504 = vpop.permute.xlu0 %503
    %505 = vrot.lane.b32.xlu0 %v424, 96
    %v506 = vpop.permute.xlu0 %505
    %507 = vrot.lane.b32.xlu0 %v425, 96
    %v508 = vpop.permute.xlu0 %507
    %509 = vrot.lane.b32.xlu0 %v426, 96
    %v510 = vpop.permute.xlu0 %509
    %519 = vmatpush.bf16.msra.mxu0 %v510
    %520 = vmatpush.bf16.msra.mxu0 %v508
    %521 = vmatpush.bf16.msra.mxu0 %v506
    %522 = vmatpush.bf16.msra.mxu0 %v504
    %523 = vmatpush.bf16.msra.mxu0 %v502
    %524 = vmatpush.bf16.msra.mxu0 %v500
    %525 = vmatpush.bf16.msra.mxu0 %v498
    %526 = vmatpush.bf16.msra.mxu0 %v496
    %527 = vmatmul.bf16.gmra.mxu0 %v494
    %v528 = vpop.f32.mrf.mxu0
    %v529 = vadd.f32 0.0, %v528
    %v530 = vpop.f32.mrf.mxu0
    %v531 = vadd.f32 0.0, %v530
    %532 = vdwg.mxu0
    %533 = vst.msk [vmem:[#allocation2] sm:$0xff] %vm427, %v529
    %vm534 = vcmask 57344
    %535 = vst.msk [vmem:[#allocation2 + $0x8] sm:$0x1] %vm534, %v531
    %536 = vrot.lane.b32.xlu0 %v386, 120
    %v537 = vpop.permute.xlu0 %536
    %538 = vrot.lane.b32.xlu0 %v419, 120
    %v539 = vpop.permute.xlu0 %538
    %540 = vrot.lane.b32.xlu0 %v420, 120
    %v541 = vpop.permute.xlu0 %540
    %542 = vrot.lane.b32.xlu0 %v421, 120
    %v543 = vpop.permute.xlu0 %542
    %544 = vrot.lane.b32.xlu0 %v422, 120
    %v545 = vpop.permute.xlu0 %544
    %546 = vrot.lane.b32.xlu0 %v423, 120
    %v547 = vpop.permute.xlu0 %546
    %548 = vrot.lane.b32.xlu0 %v424, 120
    %v549 = vpop.permute.xlu0 %548
    %550 = vrot.lane.b32.xlu0 %v425, 120
    %v551 = vpop.permute.xlu0 %550
    %552 = vrot.lane.b32.xlu0 %v426, 120
    %v553 = vpop.permute.xlu0 %552
    %v555 = vsel %vm427, %v537, 0
    %v558 = vsel %vm427, %v539, 0
    %v561 = vsel %vm427, %v541, 0
    %v564 = vsel %vm427, %v543, 0
    %v567 = vsel %vm427, %v545, 0
    %v570 = vsel %vm427, %v547, 0
    %v573 = vsel %vm427, %v549, 0
    %v576 = vsel %vm427, %v551, 0
    %v579 = vsel %vm427, %v553, 0
    %581 = vmatpush.bf16.xpose.msra.mxu0 %v579
    %582 = vmatpush.bf16.xpose.msra.mxu0 %v576
    %583 = vmatpush.bf16.xpose.msra.mxu0 %v573
    %584 = vmatpush.bf16.xpose.msra.mxu0 %v570
    %585 = vmatpush.bf16.xpose.msra.mxu0 %v567
    %586 = vmatpush.bf16.xpose.msra.mxu0 %v564
    %587 = vmatpush.bf16.xpose.msra.mxu0 %v561
    %588 = vmatpush.bf16.xpose.msra.mxu0 %v558
    %589 = vmatmul.bf16.gmra.mxu0 %v555
    %v590 = vpop.f32.mrf.mxu0
    %v591 = vadd.f32 0.0, %v590
    %v592 = vpop.f32.mrf.mxu0
    %v593 = vadd.f32 0.0, %v592
    %594 = vdwg.mxu0
    %v595 = vsel %vm381, %v591, -1e+30
    %v596 = vsel %vm381, %v593, -1e+30
    %597 = vmax.xlane.f32.xlu0 %v595
    %v598 = vpop.xlane.xlu0 %597
    %v599 = vsel %vm473, %v596, -inf
    %600 = vmax.xlane.f32.xlu0 %v599
    %v601 = vpop.xlane.xlu0 %600
    %v602 = vsub.f32 %v595, %v598
    %v603 = vsub.f32 %v596, %v601
    %v604 = vmul.f32 %v602, 1.442695
    %v605 = vpow.pop %v604
    %v606 = vmul.f32 %v603, 1.442695
    %v607 = vpow.pop %v606
    %608 = vadd.xlane.f32.xlu0 %v605
    %v609 = vpop.xlane.xlu0 %608
    %v610 = vsel %vm473, %v607, 0.0
    %611 = vadd.xlane.f32.xlu0 %v610
    %v612 = vpop.xlane.xlu0 %611
    %v613 = vrcp.pop %v609
    %v614 = vrcp.pop %v612
    %v615 = vmul.f32 %v605, %v613
    %v616 = vmul.f32 %v607, %v614
    %s617 = scalar_lea.vmem %s7, 16
    %618 = vst [vmem:[%s617] sm:$0xff] %v615
    %619 = vst [vmem:[%s617 + $0x8] sm:$0x1] %v616
    %v620 = vpack.c.bf16 %v616, %v615
    %621 = vrot.lane.b32.xlu0 %v419, 88
    %v622 = vpop.permute.xlu0 %621
    %623 = vrot.lane.b32.xlu0 %v420, 88
    %v624 = vpop.permute.xlu0 %623
    %625 = vrot.lane.b32.xlu0 %v421, 88
    %v626 = vpop.permute.xlu0 %625
    %627 = vrot.lane.b32.xlu0 %v422, 88
    %v628 = vpop.permute.xlu0 %627
    %629 = vrot.lane.b32.xlu0 %v423, 88
    %v630 = vpop.permute.xlu0 %629
    %631 = vrot.lane.b32.xlu0 %v424, 88
    %v632 = vpop.permute.xlu0 %631
    %633 = vrot.lane.b32.xlu0 %v425, 88
    %v634 = vpop.permute.xlu0 %633
    %635 = vrot.lane.b32.xlu0 %v426, 88
    %v636 = vpop.permute.xlu0 %635
    %645 = vmatpush.bf16.msra.mxu0 %v636
    %646 = vmatpush.bf16.msra.mxu0 %v634
    %647 = vmatpush.bf16.msra.mxu0 %v632
    %648 = vmatpush.bf16.msra.mxu0 %v630
    %649 = vmatpush.bf16.msra.mxu0 %v628
    %650 = vmatpush.bf16.msra.mxu0 %v626
    %651 = vmatpush.bf16.msra.mxu0 %v624
    %652 = vmatpush.bf16.msra.mxu0 %v622
    %653 = vmatmul.bf16.gmra.mxu0 %v620
    %v654 = vpop.f32.mrf.mxu0
    %v655 = vadd.f32 0.0, %v654
    %v656 = vpop.f32.mrf.mxu0
    %v657 = vadd.f32 0.0, %v656
    %658 = vdwg.mxu0
    %661 = vrot.lane.b32.xlu0 %v655, 8
    %v662 = vpop.permute.xlu0 %661
    %663 = vrot.lane.b32.xlu0 %v657, 8
    %v664 = vpop.permute.xlu0 %663
    %vm667 = vcmask 130112
    %668 = vst.msk [vmem:[#allocation2] sm:$0xff] %vm667, %v662
    %vm669 = vcmask 122944
    %670 = vst.msk [vmem:[#allocation2 + $0x8] sm:$0x1] %vm669, %v664
    %671 = vrot.lane.b32.xlu0 %v386, 112
    %v672 = vpop.permute.xlu0 %671
    %673 = vrot.lane.b32.xlu0 %v419, 112
    %v674 = vpop.permute.xlu0 %673
    %675 = vrot.lane.b32.xlu0 %v420, 112
    %v676 = vpop.permute.xlu0 %675
    %677 = vrot.lane.b32.xlu0 %v421, 112
    %v678 = vpop.permute.xlu0 %677
    %679 = vrot.lane.b32.xlu0 %v422, 112
    %v680 = vpop.permute.xlu0 %679
    %681 = vrot.lane.b32.xlu0 %v423, 112
    %v682 = vpop.permute.xlu0 %681
    %683 = vrot.lane.b32.xlu0 %v424, 112
    %v684 = vpop.permute.xlu0 %683
    %685 = vrot.lane.b32.xlu0 %v425, 112
    %v686 = vpop.permute.xlu0 %685
    %687 = vrot.lane.b32.xlu0 %v426, 112
    %v688 = vpop.permute.xlu0 %687
    %v690 = vsel %vm427, %v672, 0
    %v693 = vsel %vm427, %v674, 0
    %v696 = vsel %vm427, %v676, 0
    %v699 = vsel %vm427, %v678, 0
    %v702 = vsel %vm427, %v680, 0
    %v705 = vsel %vm427, %v682, 0
    %v708 = vsel %vm427, %v684, 0
    %v711 = vsel %vm427, %v686, 0
    %v714 = vsel %vm427, %v688, 0
    %716 = vmatpush.bf16.xpose.msra.mxu0 %v714
    %717 = vmatpush.bf16.xpose.msra.mxu0 %v711
    %718 = vmatpush.bf16.xpose.msra.mxu0 %v708
    %719 = vmatpush.bf16.xpose.msra.mxu0 %v705
    %720 = vmatpush.bf16.xpose.msra.mxu0 %v702
    %721 = vmatpush.bf16.xpose.msra.mxu0 %v699
    %722 = vmatpush.bf16.xpose.msra.mxu0 %v696
    %723 = vmatpush.bf16.xpose.msra.mxu0 %v693
    %724 = vmatmul.bf16.gmra.mxu0 %v690
    %v725 = vpop.f32.mrf.mxu0
    %v726 = vadd.f32 0.0, %v725
    %v727 = vpop.f32.mrf.mxu0
    %v728 = vadd.f32 0.0, %v727
    %729 = vdwg.mxu0
    %v730 = vsel %vm381, %v726, -1e+30
    %v731 = vsel %vm381, %v728, -1e+30
    %732 = vmax.xlane.f32.xlu0 %v730
    %v733 = vpop.xlane.xlu0 %732
    %v734 = vsel %vm473, %v731, -inf
    %735 = vmax.xlane.f32.xlu0 %v734
    %v736 = vpop.xlane.xlu0 %735
    %v737 = vsub.f32 %v730, %v733
    %v738 = vsub.f32 %v731, %v736
    %v739 = vmul.f32 %v737, 1.442695
    %v740 = vpow.pop %v739
    %v741 = vmul.f32 %v738, 1.442695
    %v742 = vpow.pop %v741
    %743 = vadd.xlane.f32.xlu0 %v740
    %v744 = vpop.xlane.xlu0 %743
    %v745 = vsel %vm473, %v742, 0.0
    %746 = vadd.xlane.f32.xlu0 %v745
    %v747 = vpop.xlane.xlu0 %746
    %v748 = vrcp.pop %v744
    %v749 = vrcp.pop %v747
    %v750 = vmul.f32 %v740, %v748
    %v751 = vmul.f32 %v742, %v749
    %s752 = scalar_lea.vmem %s7, 32
    %753 = vst [vmem:[%s752] sm:$0xff] %v750
    %754 = vst [vmem:[%s752 + $0x8] sm:$0x1] %v751
    %v755 = vpack.c.bf16 %v751, %v750
    %756 = vrot.lane.b32.xlu0 %v419, 80
    %v757 = vpop.permute.xlu0 %756
    %758 = vrot.lane.b32.xlu0 %v420, 80
    %v759 = vpop.permute.xlu0 %758
    %760 = vrot.lane.b32.xlu0 %v421, 80
    %v761 = vpop.permute.xlu0 %760
    %762 = vrot.lane.b32.xlu0 %v422, 80
    %v763 = vpop.permute.xlu0 %762
    %764 = vrot.lane.b32.xlu0 %v423, 80
    %v765 = vpop.permute.xlu0 %764
    %766 = vrot.lane.b32.xlu0 %v424, 80
    %v767 = vpop.permute.xlu0 %766
    %768 = vrot.lane.b32.xlu0 %v425, 80
    %v769 = vpop.permute.xlu0 %768
    %770 = vrot.lane.b32.xlu0 %v426, 80
    %v771 = vpop.permute.xlu0 %770
    %780 = vmatpush.bf16.msra.mxu0 %v771
    %781 = vmatpush.bf16.msra.mxu0 %v769
    %782 = vmatpush.bf16.msra.mxu0 %v767
    %783 = vmatpush.bf16.msra.mxu0 %v765
    %784 = vmatpush.bf16.msra.mxu0 %v763
    %785 = vmatpush.bf16.msra.mxu0 %v761
    %786 = vmatpush.bf16.msra.mxu0 %v759
    %787 = vmatpush.bf16.msra.mxu0 %v757
    %788 = vmatmul.bf16.gmra.mxu0 %v755
    %v789 = vpop.f32.mrf.mxu0
    %v790 = vadd.f32 0.0, %v789
    %v791 = vpop.f32.mrf.mxu0
    %v792 = vadd.f32 0.0, %v791
    %793 = vdwg.mxu0
    %796 = vrot.lane.b32.xlu0 %v790, 16
    %v797 = vpop.permute.xlu0 %796
    %798 = vrot.lane.b32.xlu0 %v792, 16
    %v799 = vpop.permute.xlu0 %798
    %vm802 = vcmask 195712
    %803 = vst.msk [vmem:[#allocation2] sm:$0xff] %vm802, %v797
    %vm804 = vcmask 188544
    %805 = vst.msk [vmem:[#allocation2 + $0x8] sm:$0x1] %vm804, %v799
    %806 = vrot.lane.b32.xlu0 %v386, 104
    %v807 = vpop.permute.xlu0 %806
    %808 = vrot.lane.b32.xlu0 %v419, 104
    %v809 = vpop.permute.xlu0 %808
    %810 = vrot.lane.b32.xlu0 %v420, 104
    %v811 = vpop.permute.xlu0 %810
    %812 = vrot.lane.b32.xlu0 %v421, 104
    %v813 = vpop.permute.xlu0 %812
    %814 = vrot.lane.b32.xlu0 %v422, 104
    %v815 = vpop.permute.xlu0 %814
    %816 = vrot.lane.b32.xlu0 %v423, 104
    %v817 = vpop.permute.xlu0 %816
    %818 = vrot.lane.b32.xlu0 %v424, 104
    %v819 = vpop.permute.xlu0 %818
    %820 = vrot.lane.b32.xlu0 %v425, 104
    %v821 = vpop.permute.xlu0 %820
    %822 = vrot.lane.b32.xlu0 %v426, 104
    %v823 = vpop.permute.xlu0 %822
    %v825 = vsel %vm427, %v807, 0
    %v828 = vsel %vm427, %v809, 0
    %v831 = vsel %vm427, %v811, 0
    %v834 = vsel %vm427, %v813, 0
    %v837 = vsel %vm427, %v815, 0
    %v840 = vsel %vm427, %v817, 0
    %v843 = vsel %vm427, %v819, 0
    %v846 = vsel %vm427, %v821, 0
    %v849 = vsel %vm427, %v823, 0
    %851 = vmatpush.bf16.xpose.msra.mxu0 %v849
    %852 = vmatpush.bf16.xpose.msra.mxu0 %v846
    %853 = vmatpush.bf16.xpose.msra.mxu0 %v843
    %854 = vmatpush.bf16.xpose.msra.mxu0 %v840
    %855 = vmatpush.bf16.xpose.msra.mxu0 %v837
    %856 = vmatpush.bf16.xpose.msra.mxu0 %v834
    %857 = vmatpush.bf16.xpose.msra.mxu0 %v831
    %858 = vmatpush.bf16.xpose.msra.mxu0 %v828
    %859 = vmatmul.bf16.gmra.mxu0 %v825
    %v860 = vpop.f32.mrf.mxu0
    %v861 = vadd.f32 0.0, %v860
    %v862 = vpop.f32.mrf.mxu0
    %v863 = vadd.f32 0.0, %v862
    %864 = vdwg.mxu0
    %v865 = vsel %vm381, %v861, -1e+30
    %v866 = vsel %vm381, %v863, -1e+30
    %867 = vmax.xlane.f32.xlu0 %v865
    %v868 = vpop.xlane.xlu0 %867
    %v869 = vsel %vm473, %v866, -inf
    %870 = vmax.xlane.f32.xlu0 %v869
    %v871 = vpop.xlane.xlu0 %870
    %v872 = vsub.f32 %v865, %v868
    %v873 = vsub.f32 %v866, %v871
    %v874 = vmul.f32 %v872, 1.442695
    %v875 = vpow.pop %v874
    %v876 = vmul.f32 %v873, 1.442695
    %v877 = vpow.pop %v876
    %878 = vadd.xlane.f32.xlu0 %v875
    %v879 = vpop.xlane.xlu0 %878
    %v880 = vsel %vm473, %v877, 0.0
    %881 = vadd.xlane.f32.xlu0 %v880
    %v882 = vpop.xlane.xlu0 %881
    %v883 = vrcp.pop %v879
    %v884 = vrcp.pop %v882
    %v885 = vmul.f32 %v875, %v883
    %v886 = vmul.f32 %v877, %v884
    %s887 = scalar_lea.vmem %s7, 48
    %888 = vst [vmem:[%s887] sm:$0xff] %v885
    %889 = vst [vmem:[%s887 + $0x8] sm:$0x1] %v886
    %v890 = vpack.c.bf16 %v886, %v885
    %891 = vrot.lane.b32.xlu0 %v419, 72
    %v892 = vpop.permute.xlu0 %891
    %893 = vrot.lane.b32.xlu0 %v420, 72
    %v894 = vpop.permute.xlu0 %893
    %895 = vrot.lane.b32.xlu0 %v421, 72
    %v896 = vpop.permute.xlu0 %895
    %897 = vrot.lane.b32.xlu0 %v422, 72
    %v898 = vpop.permute.xlu0 %897
    %899 = vrot.lane.b32.xlu0 %v423, 72
    %v900 = vpop.permute.xlu0 %899
    %901 = vrot.lane.b32.xlu0 %v424, 72
    %v902 = vpop.permute.xlu0 %901
    %903 = vrot.lane.b32.xlu0 %v425, 72
    %v904 = vpop.permute.xlu0 %903
    %905 = vrot.lane.b32.xlu0 %v426, 72
    %v906 = vpop.permute.xlu0 %905
    %915 = vmatpush.bf16.msra.mxu0 %v906
    %916 = vmatpush.bf16.msra.mxu0 %v904
    %917 = vmatpush.bf16.msra.mxu0 %v902
    %918 = vmatpush.bf16.msra.mxu0 %v900
    %919 = vmatpush.bf16.msra.mxu0 %v898
    %920 = vmatpush.bf16.msra.mxu0 %v896
    %921 = vmatpush.bf16.msra.mxu0 %v894
    %922 = vmatpush.bf16.msra.mxu0 %v892
    %923 = vmatmul.bf16.gmra.mxu0 %v890
    %v924 = vpop.f32.mrf.mxu0
    %v925 = vadd.f32 0.0, %v924
    %v926 = vpop.f32.mrf.mxu0
    %v927 = vadd.f32 0.0, %v926
    %928 = vdwg.mxu0
    %931 = vrot.lane.b32.xlu0 %v925, 24
    %v932 = vpop.permute.xlu0 %931
    %933 = vrot.lane.b32.xlu0 %v927, 24
    %v934 = vpop.permute.xlu0 %933
    %vm937 = vcmask 261312
    %938 = vst.msk [vmem:[#allocation2] sm:$0xff] %vm937, %v932
    %vm939 = vcmask 254144
    %940 = vst.msk [vmem:[#allocation2 + $0x8] sm:$0x1] %vm939, %v934
    %v942 = vunpack.c.l.b16 %v346
    %v943 = vpack.c.b16 %v942, %v385
    %v945 = vshrl.u32 %v943, 16
    %v947 = vshll.u32 %v943, 16
    %v949 = vrot.slane %v947, 1
    %v950 = vor.u32 %v945, %v949
    %v967 = vunpack.c.l.b16 %v363
    %v968 = vunpack.c.l.b16 %v364
    %v969 = vunpack.c.l.b16 %v365
    %v970 = vunpack.c.l.b16 %v366
    %v971 = vunpack.c.l.b16 %v367
    %v972 = vunpack.c.l.b16 %v368
    %v973 = vunpack.c.l.b16 %v369
    %v974 = vunpack.c.l.b16 %v370
    %v975 = vunpack.c.l.b16 %v371
    %v976 = vunpack.c.l.b16 %v372
    %v977 = vunpack.c.l.b16 %v373
    %v978 = vunpack.c.l.b16 %v374
    %v979 = vunpack.c.l.b16 %v375
    %v980 = vunpack.c.l.b16 %v376
    %v981 = vunpack.c.l.b16 %v377
    %v982 = vunpack.c.l.b16 %v378
    %v983 = vpack.c.b16 %v968, %v967
    %v984 = vpack.c.b16 %v970, %v969
    %v985 = vpack.c.b16 %v972, %v971
    %v986 = vpack.c.b16 %v974, %v973
    %v987 = vpack.c.b16 %v976, %v975
    %v988 = vpack.c.b16 %v978, %v977
    %v989 = vpack.c.b16 %v980, %v979
    %v990 = vpack.c.b16 %v982, %v981
    %v992 = vsel %vm427, %v950, 0
    %v995 = vsel %vm427, %v983, 0
    %v998 = vsel %vm427, %v984, 0
    %v1001 = vsel %vm427, %v985, 0
    %v1004 = vsel %vm427, %v986, 0
    %v1007 = vsel %vm427, %v987, 0
    %v1010 = vsel %vm427, %v988, 0
    %v1013 = vsel %vm427, %v989, 0
    %v1016 = vsel %vm427, %v990, 0
    %1018 = vmatpush.bf16.xpose.msra.mxu0 %v1016
    %1019 = vmatpush.bf16.xpose.msra.mxu0 %v1013
    %1020 = vmatpush.bf16.xpose.msra.mxu0 %v1010
    %1021 = vmatpush.bf16.xpose.msra.mxu0 %v1007
    %1022 = vmatpush.bf16.xpose.msra.mxu0 %v1004
    %1023 = vmatpush.bf16.xpose.msra.mxu0 %v1001
    %1024 = vmatpush.bf16.xpose.msra.mxu0 %v998
    %1025 = vmatpush.bf16.xpose.msra.mxu0 %v995
    %1026 = vmatmul.bf16.gmra.mxu0 %v992
    %v1027 = vpop.f32.mrf.mxu0
    %v1028 = vadd.f32 0.0, %v1027
    %v1029 = vpop.f32.mrf.mxu0
    %v1030 = vadd.f32 0.0, %v1029
    %1031 = vdwg.mxu0
    %v1032 = vsel %vm381, %v1028, -1e+30
    %v1033 = vsel %vm381, %v1030, -1e+30
    %1034 = vmax.xlane.f32.xlu0 %v1032
    %v1035 = vpop.xlane.xlu0 %1034
    %v1036 = vsel %vm473, %v1033, -inf
    %1037 = vmax.xlane.f32.xlu0 %v1036
    %v1038 = vpop.xlane.xlu0 %1037
    %v1039 = vsub.f32 %v1032, %v1035
    %v1040 = vsub.f32 %v1033, %v1038
    %v1041 = vmul.f32 %v1039, 1.442695
    %v1042 = vpow.pop %v1041
    %v1043 = vmul.f32 %v1040, 1.442695
    %v1044 = vpow.pop %v1043
    %1045 = vadd.xlane.f32.xlu0 %v1042
    %v1046 = vpop.xlane.xlu0 %1045
    %v1047 = vsel %vm473, %v1044, 0.0
    %1048 = vadd.xlane.f32.xlu0 %v1047
    %v1049 = vpop.xlane.xlu0 %1048
    %v1050 = vrcp.pop %v1046
    %v1051 = vrcp.pop %v1049
    %v1052 = vmul.f32 %v1042, %v1050
    %v1053 = vmul.f32 %v1044, %v1051
    %s1054 = scalar_lea.vmem %s7, 64
    %1055 = vst [vmem:[%s1054] sm:$0xff] %v1052
    %1056 = vst [vmem:[%s1054 + $0x8] sm:$0x1] %v1053
    %v1057 = vpack.c.bf16 %v1053, %v1052
    %1058 = vrot.lane.b32.xlu0 %v983, 96
    %v1059 = vpop.permute.xlu0 %1058
    %1060 = vrot.lane.b32.xlu0 %v984, 96
    %v1061 = vpop.permute.xlu0 %1060
    %1062 = vrot.lane.b32.xlu0 %v985, 96
    %v1063 = vpop.permute.xlu0 %1062
    %1064 = vrot.lane.b32.xlu0 %v986, 96
    %v1065 = vpop.permute.xlu0 %1064
    %1066 = vrot.lane.b32.xlu0 %v987, 96
    %v1067 = vpop.permute.xlu0 %1066
    %1068 = vrot.lane.b32.xlu0 %v988, 96
    %v1069 = vpop.permute.xlu0 %1068
    %1070 = vrot.lane.b32.xlu0 %v989, 96
    %v1071 = vpop.permute.xlu0 %1070
    %1072 = vrot.lane.b32.xlu0 %v990, 96
    %v1073 = vpop.permute.xlu0 %1072
    %1082 = vmatpush.bf16.msra.mxu0 %v1073
    %1083 = vmatpush.bf16.msra.mxu0 %v1071
    %1084 = vmatpush.bf16.msra.mxu0 %v1069
    %1085 = vmatpush.bf16.msra.mxu0 %v1067
    %1086 = vmatpush.bf16.msra.mxu0 %v1065
    %1087 = vmatpush.bf16.msra.mxu0 %v1063
    %1088 = vmatpush.bf16.msra.mxu0 %v1061
    %1089 = vmatpush.bf16.msra.mxu0 %v1059
    %1090 = vmatmul.bf16.gmra.mxu0 %v1057
    %v1091 = vpop.f32.mrf.mxu0
    %v1092 = vadd.f32 0.0, %v1091
    %v1093 = vpop.f32.mrf.mxu0
    %v1094 = vadd.f32 0.0, %v1093
    %1095 = vdwg.mxu0
    %1096 = vst.msk [vmem:[#allocation2 + $0x9] sm:$0xff] %vm427, %v1092
    %1097 = vst.msk [vmem:[#allocation2 + $0x11] sm:$0x1] %vm534, %v1094
    %1098 = vrot.lane.b32.xlu0 %v950, 120
    %v1099 = vpop.permute.xlu0 %1098
    %1100 = vrot.lane.b32.xlu0 %v983, 120
    %v1101 = vpop.permute.xlu0 %1100
    %1102 = vrot.lane.b32.xlu0 %v984, 120
    %v1103 = vpop.permute.xlu0 %1102
    %1104 = vrot.lane.b32.xlu0 %v985, 120
    %v1105 = vpop.permute.xlu0 %1104
    %1106 = vrot.lane.b32.xlu0 %v986, 120
    %v1107 = vpop.permute.xlu0 %1106
    %1108 = vrot.lane.b32.xlu0 %v987, 120
    %v1109 = vpop.permute.xlu0 %1108
    %1110 = vrot.lane.b32.xlu0 %v988, 120
    %v1111 = vpop.permute.xlu0 %1110
    %1112 = vrot.lane.b32.xlu0 %v989, 120
    %v1113 = vpop.permute.xlu0 %1112
    %1114 = vrot.lane.b32.xlu0 %v990, 120
    %v1115 = vpop.permute.xlu0 %1114
    %v1117 = vsel %vm427, %v1099, 0
    %v1120 = vsel %vm427, %v1101, 0
    %v1123 = vsel %vm427, %v1103, 0
    %v1126 = vsel %vm427, %v1105, 0
    %v1129 = vsel %vm427, %v1107, 0
    %v1132 = vsel %vm427, %v1109, 0
    %v1135 = vsel %vm427, %v1111, 0
    %v1138 = vsel %vm427, %v1113, 0
    %v1141 = vsel %vm427, %v1115, 0
    %1143 = vmatpush.bf16.xpose.msra.mxu0 %v1141
    %1144 = vmatpush.bf16.xpose.msra.mxu0 %v1138
    %1145 = vmatpush.bf16.xpose.msra.mxu0 %v1135
    %1146 = vmatpush.bf16.xpose.msra.mxu0 %v1132
    %1147 = vmatpush.bf16.xpose.msra.mxu0 %v1129
    %1148 = vmatpush.bf16.xpose.msra.mxu0 %v1126
    %1149 = vmatpush.bf16.xpose.msra.mxu0 %v1123
    %1150 = vmatpush.bf16.xpose.msra.mxu0 %v1120
    %1151 = vmatmul.bf16.gmra.mxu0 %v1117
    %v1152 = vpop.f32.mrf.mxu0
    %v1153 = vadd.f32 0.0, %v1152
    %v1154 = vpop.f32.mrf.mxu0
    %v1155 = vadd.f32 0.0, %v1154
    %1156 = vdwg.mxu0
    %v1157 = vsel %vm381, %v1153, -1e+30
    %v1158 = vsel %vm381, %v1155, -1e+30
    %1159 = vmax.xlane.f32.xlu0 %v1157
    %v1160 = vpop.xlane.xlu0 %1159
    %v1161 = vsel %vm473, %v1158, -inf
    %1162 = vmax.xlane.f32.xlu0 %v1161
    %v1163 = vpop.xlane.xlu0 %1162
    %v1164 = vsub.f32 %v1157, %v1160
    %v1165 = vsub.f32 %v1158, %v1163
    %v1166 = vmul.f32 %v1164, 1.442695
    %v1167 = vpow.pop %v1166
    %v1168 = vmul.f32 %v1165, 1.442695
    %v1169 = vpow.pop %v1168
    %1170 = vadd.xlane.f32.xlu0 %v1167
    %v1171 = vpop.xlane.xlu0 %1170
    %v1172 = vsel %vm473, %v1169, 0.0
    %1173 = vadd.xlane.f32.xlu0 %v1172
    %v1174 = vpop.xlane.xlu0 %1173
    %v1175 = vrcp.pop %v1171
    %v1176 = vrcp.pop %v1174
    %v1177 = vmul.f32 %v1167, %v1175
    %v1178 = vmul.f32 %v1169, %v1176
    %s1179 = scalar_lea.vmem %s7, 80
    %1180 = vst [vmem:[%s1179] sm:$0xff] %v1177
    %1181 = vst [vmem:[%s1179 + $0x8] sm:$0x1] %v1178
    %v1182 = vpack.c.bf16 %v1178, %v1177
    %1183 = vrot.lane.b32.xlu0 %v983, 88
    %v1184 = vpop.permute.xlu0 %1183
    %1185 = vrot.lane.b32.xlu0 %v984, 88
    %v1186 = vpop.permute.xlu0 %1185
    %1187 = vrot.lane.b32.xlu0 %v985, 88
    %v1188 = vpop.permute.xlu0 %1187
    %1189 = vrot.lane.b32.xlu0 %v986, 88
    %v1190 = vpop.permute.xlu0 %1189
    %1191 = vrot.lane.b32.xlu0 %v987, 88
    %v1192 = vpop.permute.xlu0 %1191
    %1193 = vrot.lane.b32.xlu0 %v988, 88
    %v1194 = vpop.permute.xlu0 %1193
    %1195 = vrot.lane.b32.xlu0 %v989, 88
    %v1196 = vpop.permute.xlu0 %1195
    %1197 = vrot.lane.b32.xlu0 %v990, 88
    %v1198 = vpop.permute.xlu0 %1197
    %1207 = vmatpush.bf16.msra.mxu0 %v1198
    %1208 = vmatpush.bf16.msra.mxu0 %v1196
    %1209 = vmatpush.bf16.msra.mxu0 %v1194
    %1210 = vmatpush.bf16.msra.mxu0 %v1192
    %1211 = vmatpush.bf16.msra.mxu0 %v1190
    %1212 = vmatpush.bf16.msra.mxu0 %v1188
    %1213 = vmatpush.bf16.msra.mxu0 %v1186
    %1214 = vmatpush.bf16.msra.mxu0 %v1184
    %1215 = vmatmul.bf16.gmra.mxu0 %v1182
    %v1216 = vpop.f32.mrf.mxu0
    %v1217 = vadd.f32 0.0, %v1216
    %v1218 = vpop.f32.mrf.mxu0
    %v1219 = vadd.f32 0.0, %v1218
    %1220 = vdwg.mxu0
    %1223 = vrot.lane.b32.xlu0 %v1217, 8
    %v1224 = vpop.permute.xlu0 %1223
    %1225 = vrot.lane.b32.xlu0 %v1219, 8
    %v1226 = vpop.permute.xlu0 %1225
    %1229 = vst.msk [vmem:[#allocation2 + $0x9] sm:$0xff] %vm667, %v1224
    %1230 = vst.msk [vmem:[#allocation2 + $0x11] sm:$0x1] %vm669, %v1226
    %1231 = vrot.lane.b32.xlu0 %v950, 112
    %v1232 = vpop.permute.xlu0 %1231
    %1233 = vrot.lane.b32.xlu0 %v983, 112
    %v1234 = vpop.permute.xlu0 %1233
    %1235 = vrot.lane.b32.xlu0 %v984, 112
    %v1236 = vpop.permute.xlu0 %1235
    %1237 = vrot.lane.b32.xlu0 %v985, 112
    %v1238 = vpop.permute.xlu0 %1237
    %1239 = vrot.lane.b32.xlu0 %v986, 112
    %v1240 = vpop.permute.xlu0 %1239
    %1241 = vrot.lane.b32.xlu0 %v987, 112
    %v1242 = vpop.permute.xlu0 %1241
    %1243 = vrot.lane.b32.xlu0 %v988, 112
    %v1244 = vpop.permute.xlu0 %1243
    %1245 = vrot.lane.b32.xlu0 %v989, 112
    %v1246 = vpop.permute.xlu0 %1245
    %1247 = vrot.lane.b32.xlu0 %v990, 112
    %v1248 = vpop.permute.xlu0 %1247
    %v1250 = vsel %vm427, %v1232, 0
    %v1253 = vsel %vm427, %v1234, 0
    %v1256 = vsel %vm427, %v1236, 0
    %v1259 = vsel %vm427, %v1238, 0
    %v1262 = vsel %vm427, %v1240, 0
    %v1265 = vsel %vm427, %v1242, 0
    %v1268 = vsel %vm427, %v1244, 0
    %v1271 = vsel %vm427, %v1246, 0
    %v1274 = vsel %vm427, %v1248, 0
    %1276 = vmatpush.bf16.xpose.msra.mxu0 %v1274
    %1277 = vmatpush.bf16.xpose.msra.mxu0 %v1271
    %1278 = vmatpush.bf16.xpose.msra.mxu0 %v1268
    %1279 = vmatpush.bf16.xpose.msra.mxu0 %v1265
    %1280 = vmatpush.bf16.xpose.msra.mxu0 %v1262
    %1281 = vmatpush.bf16.xpose.msra.mxu0 %v1259
    %1282 = vmatpush.bf16.xpose.msra.mxu0 %v1256
    %1283 = vmatpush.bf16.xpose.msra.mxu0 %v1253
    %1284 = vmatmul.bf16.gmra.mxu0 %v1250
    %v1285 = vpop.f32.mrf.mxu0
    %v1286 = vadd.f32 0.0, %v1285
    %v1287 = vpop.f32.mrf.mxu0
    %v1288 = vadd.f32 0.0, %v1287
    %1289 = vdwg.mxu0
    %v1290 = vsel %vm381, %v1286, -1e+30
    %v1291 = vsel %vm381, %v1288, -1e+30
    %1292 = vmax.xlane.f32.xlu0 %v1290
    %v1293 = vpop.xlane.xlu0 %1292
    %v1294 = vsel %vm473, %v1291, -inf
    %1295 = vmax.xlane.f32.xlu0 %v1294
    %v1296 = vpop.xlane.xlu0 %1295
    %v1297 = vsub.f32 %v1290, %v1293
    %v1298 = vsub.f32 %v1291, %v1296
    %v1299 = vmul.f32 %v1297, 1.442695
    %v1300 = vpow.pop %v1299
    %v1301 = vmul.f32 %v1298, 1.442695
    %v1302 = vpow.pop %v1301
    %1303 = vadd.xlane.f32.xlu0 %v1300
    %v1304 = vpop.xlane.xlu0 %1303
    %v1305 = vsel %vm473, %v1302, 0.0
    %1306 = vadd.xlane.f32.xlu0 %v1305
    %v1307 = vpop.xlane.xlu0 %1306
    %v1308 = vrcp.pop %v1304
    %v1309 = vrcp.pop %v1307
    %v1310 = vmul.f32 %v1300, %v1308
    %v1311 = vmul.f32 %v1302, %v1309
    %s1312 = scalar_lea.vmem %s7, 96
    %1313 = vst [vmem:[%s1312] sm:$0xff] %v1310
    %1314 = vst [vmem:[%s1312 + $0x8] sm:$0x1] %v1311
    %v1315 = vpack.c.bf16 %v1311, %v1310
    %1316 = vrot.lane.b32.xlu0 %v983, 80
    %v1317 = vpop.permute.xlu0 %1316
    %1318 = vrot.lane.b32.xlu0 %v984, 80
    %v1319 = vpop.permute.xlu0 %1318
    %1320 = vrot.lane.b32.xlu0 %v985, 80
    %v1321 = vpop.permute.xlu0 %1320
    %1322 = vrot.lane.b32.xlu0 %v986, 80
    %v1323 = vpop.permute.xlu0 %1322
    %1324 = vrot.lane.b32.xlu0 %v987, 80
    %v1325 = vpop.permute.xlu0 %1324
    %1326 = vrot.lane.b32.xlu0 %v988, 80
    %v1327 = vpop.permute.xlu0 %1326
    %1328 = vrot.lane.b32.xlu0 %v989, 80
    %v1329 = vpop.permute.xlu0 %1328
    %1330 = vrot.lane.b32.xlu0 %v990, 80
    %v1331 = vpop.permute.xlu0 %1330
    %1340 = vmatpush.bf16.msra.mxu0 %v1331
    %1341 = vmatpush.bf16.msra.mxu0 %v1329
    %1342 = vmatpush.bf16.msra.mxu0 %v1327
    %1343 = vmatpush.bf16.msra.mxu0 %v1325
    %1344 = vmatpush.bf16.msra.mxu0 %v1323
    %1345 = vmatpush.bf16.msra.mxu0 %v1321
    %1346 = vmatpush.bf16.msra.mxu0 %v1319
    %1347 = vmatpush.bf16.msra.mxu0 %v1317
    %1348 = vmatmul.bf16.gmra.mxu0 %v1315
    %v1349 = vpop.f32.mrf.mxu0
    %v1350 = vadd.f32 0.0, %v1349
    %v1351 = vpop.f32.mrf.mxu0
    %v1352 = vadd.f32 0.0, %v1351
    %1353 = vdwg.mxu0
    %1356 = vrot.lane.b32.xlu0 %v1350, 16
    %v1357 = vpop.permute.xlu0 %1356
    %1358 = vrot.lane.b32.xlu0 %v1352, 16
    %v1359 = vpop.permute.xlu0 %1358
    %1362 = vst.msk [vmem:[#allocation2 + $0x9] sm:$0xff] %vm802, %v1357
    %1363 = vst.msk [vmem:[#allocation2 + $0x11] sm:$0x1] %vm804, %v1359
    %1364 = vrot.lane.b32.xlu0 %v950, 104
    %v1365 = vpop.permute.xlu0 %1364
    %1366 = vrot.lane.b32.xlu0 %v983, 104
    %v1367 = vpop.permute.xlu0 %1366
    %1368 = vrot.lane.b32.xlu0 %v984, 104
    %v1369 = vpop.permute.xlu0 %1368
    %1370 = vrot.lane.b32.xlu0 %v985, 104
    %v1371 = vpop.permute.xlu0 %1370
    %1372 = vrot.lane.b32.xlu0 %v986, 104
    %v1373 = vpop.permute.xlu0 %1372
    %1374 = vrot.lane.b32.xlu0 %v987, 104
    %v1375 = vpop.permute.xlu0 %1374
    %1376 = vrot.lane.b32.xlu0 %v988, 104
    %v1377 = vpop.permute.xlu0 %1376
    %1378 = vrot.lane.b32.xlu0 %v989, 104
    %v1379 = vpop.permute.xlu0 %1378
    %1380 = vrot.lane.b32.xlu0 %v990, 104
    %v1381 = vpop.permute.xlu0 %1380
    %v1383 = vsel %vm427, %v1365, 0
    %v1386 = vsel %vm427, %v1367, 0
    %v1389 = vsel %vm427, %v1369, 0
    %v1392 = vsel %vm427, %v1371, 0
    %v1395 = vsel %vm427, %v1373, 0
    %v1398 = vsel %vm427, %v1375, 0
    %v1401 = vsel %vm427, %v1377, 0
    %v1404 = vsel %vm427, %v1379, 0
    %v1407 = vsel %vm427, %v1381, 0
    %1409 = vmatpush.bf16.xpose.msra.mxu0 %v1407
    %1410 = vmatpush.bf16.xpose.msra.mxu0 %v1404
    %1411 = vmatpush.bf16.xpose.msra.mxu0 %v1401
    %1412 = vmatpush.bf16.xpose.msra.mxu0 %v1398
    %1413 = vmatpush.bf16.xpose.msra.mxu0 %v1395
    %1414 = vmatpush.bf16.xpose.msra.mxu0 %v1392
    %1415 = vmatpush.bf16.xpose.msra.mxu0 %v1389
    %1416 = vmatpush.bf16.xpose.msra.mxu0 %v1386
    %1417 = vmatmul.bf16.gmra.mxu0 %v1383
    %v1418 = vpop.f32.mrf.mxu0
    %v1419 = vadd.f32 0.0, %v1418
    %v1420 = vpop.f32.mrf.mxu0
    %v1421 = vadd.f32 0.0, %v1420
    %1422 = vdwg.mxu0
    %v1423 = vsel %vm381, %v1419, -1e+30
    %v1424 = vsel %vm381, %v1421, -1e+30
    %1425 = vmax.xlane.f32.xlu0 %v1423
    %v1426 = vpop.xlane.xlu0 %1425
    %v1427 = vsel %vm473, %v1424, -inf
    %1428 = vmax.xlane.f32.xlu0 %v1427
    %v1429 = vpop.xlane.xlu0 %1428
    %v1430 = vsub.f32 %v1423, %v1426
    %v1431 = vsub.f32 %v1424, %v1429
    %v1432 = vmul.f32 %v1430, 1.442695
    %v1433 = vpow.pop %v1432
    %v1434 = vmul.f32 %v1431, 1.442695
    %v1435 = vpow.pop %v1434
    %1436 = vadd.xlane.f32.xlu0 %v1433
    %v1437 = vpop.xlane.xlu0 %1436
    %v1438 = vsel %vm473, %v1435, 0.0
    %1439 = vadd.xlane.f32.xlu0 %v1438
    %v1440 = vpop.xlane.xlu0 %1439
    %v1441 = vrcp.pop %v1437
    %v1442 = vrcp.pop %v1440
    %v1443 = vmul.f32 %v1433, %v1441
    %v1444 = vmul.f32 %v1435, %v1442
    %s1445 = scalar_lea.vmem %s7, 112
    %1446 = vst [vmem:[%s1445] sm:$0xff] %v1443
    %1447 = vst [vmem:[%s1445 + $0x8] sm:$0x1] %v1444
    %v1448 = vpack.c.bf16 %v1444, %v1443
    %1449 = vrot.lane.b32.xlu0 %v983, 72
    %v1450 = vpop.permute.xlu0 %1449
    %1451 = vrot.lane.b32.xlu0 %v984, 72
    %v1452 = vpop.permute.xlu0 %1451
    %1453 = vrot.lane.b32.xlu0 %v985, 72
    %v1454 = vpop.permute.xlu0 %1453
    %1455 = vrot.lane.b32.xlu0 %v986, 72
    %v1456 = vpop.permute.xlu0 %1455
    %1457 = vrot.lane.b32.xlu0 %v987, 72
    %v1458 = vpop.permute.xlu0 %1457
    %1459 = vrot.lane.b32.xlu0 %v988, 72
    %v1460 = vpop.permute.xlu0 %1459
    %1461 = vrot.lane.b32.xlu0 %v989, 72
    %v1462 = vpop.permute.xlu0 %1461
    %1463 = vrot.lane.b32.xlu0 %v990, 72
    %v1464 = vpop.permute.xlu0 %1463
    %1473 = vmatpush.bf16.msra.mxu0 %v1464
    %1474 = vmatpush.bf16.msra.mxu0 %v1462
    %1475 = vmatpush.bf16.msra.mxu0 %v1460
    %1476 = vmatpush.bf16.msra.mxu0 %v1458
    %1477 = vmatpush.bf16.msra.mxu0 %v1456
    %1478 = vmatpush.bf16.msra.mxu0 %v1454
    %1479 = vmatpush.bf16.msra.mxu0 %v1452
    %1480 = vmatpush.bf16.msra.mxu0 %v1450
    %1481 = vmatmul.bf16.gmra.mxu0 %v1448
    %v1482 = vpop.f32.mrf.mxu0
    %v1483 = vadd.f32 0.0, %v1482
    %v1484 = vpop.f32.mrf.mxu0
    %v1485 = vadd.f32 0.0, %v1484
    %1486 = vdwg.mxu0
    %1489 = vrot.lane.b32.xlu0 %v1483, 24
    %v1490 = vpop.permute.xlu0 %1489
    %1491 = vrot.lane.b32.xlu0 %v1485, 24
    %v1492 = vpop.permute.xlu0 %1491
    %1495 = vst.msk [vmem:[#allocation2 + $0x9] sm:$0xff] %vm937, %v1490
    %1496 = vst.msk [vmem:[#allocation2 + $0x11] sm:$0x1] %vm939, %v1492
    %v1497 = vld [vmem:[#allocation2] sm:$0xff]
    %v1498 = vld [vmem:[#allocation2 + $0x8] sm:$0xff]
    %v1499 = vld [vmem:[#allocation2 + $0x10] sm:$0x3]
    %v1500 = vpack.c.bf16 %v1498, %v1497
    %v1501 = vpack.c.bf16 %v1499, %v1499
    %v1502 = vld [vmem:[%s4] sm:$0xf]
    %v1503 = vld [vmem:[%s4 + $0x4] sm:$0xf]
    %v1504 = vld [vmem:[%s4 + $0x8] sm:$0xf]
    %v1505 = vld [vmem:[%s4 + $0xc] sm:$0xf]
    %v1506 = vld [vmem:[%s5] sm:$0x1]
    %v1508 = vperm.slane %v1506, 0
    %v1514 = vunpack.c.l.b16 %v1502
    %v1515 = vunpack.c.l.b16 %v1503
    %v1516 = vunpack.c.l.b16 %v1504
    %v1517 = vunpack.c.l.b16 %v1505
    %v1518 = vpack.c.b16 %v1515, %v1514
    %v1519 = vpack.c.b16 %v1517, %v1516
    %v1523 = vsel %vm54, %v1500, 0
    %v1526 = vsel %vm54, %v1501, 0
    %1528 = vmatpush.bf16.msra.mxu0 0
    %1529 = vmatpush.bf16.msra.mxu0 0
    %1530 = vmatpush.bf16.msra.mxu0 0
    %1531 = vmatpush.bf16.msra.mxu0 0
    %1532 = vmatpush.bf16.msra.mxu0 0
    %1533 = vmatpush.bf16.msra.mxu0 0
    %1534 = vmatpush.bf16.msra.mxu0 %v1519
    %1535 = vmatpush.bf16.msra.mxu0 %v1518
    %1536 = vmatmul.bf16.gmra.mxu0 %v1523
    %v1537 = vpop.f32.mrf.mxu0
    %v1538 = vadd.f32 %v1508, %v1537
    %v1539 = vpop.f32.mrf.mxu0
    %v1540 = vadd.f32 %v1508, %v1539
    %1541 = vmatmul.bf16.gmra.mxu0 %v1526
    %v1542 = vpop.f32.mrf.mxu0
    %v1543 = vadd.f32 %v1508, %v1542
    %v1544 = vpop.f32.mrf.mxu0
    %1545 = vdwg.mxu0
    %1546 = vst.msk [vmem:[#allocation3] sm:$0xff] %vm54, %v1538
    %1547 = vst.msk [vmem:[#allocation3 + $0x8] sm:$0xff] %vm54, %v1540
    %vm1548 = vcmask 254976
    %1549 = vst.msk [vmem:[#allocation3 + $0x10] sm:$0x3] %vm1548, %v1543
    // Predicated region
    $region26: #{tpu_custom_call.1} parent=1 // pred_check
      _
    $region27: #{tpu_custom_call.1} parent=1 // pred_check_branch
      %1551 = sbr.rel (0) target = $region29
    $region28: #{tpu_custom_call.1} parent=1 // pred_region
      %1553 = vsyncadd [#allocation4], 0
      %s1554 = sshll.u32 [#allocation3], 4
      %s1555 = int_to_ptr.vmem [resolvable:$true] %s1554
      %s1556 = sshll.u32 %s6, 4
      %s1557 = int_to_ptr.hbm [resolvable:$true] %s1556
      %1562 = dma.vmem_to_hbm [thread:$0]  %s1555, 384, %s1557, [#allocation4], 128, 128, 8
    $region29: #{tpu_custom_call.1} parent=1 // pred_fallthru
      _
    // Predicated region
    $region30: #{tpu_custom_call.1} parent=1 // pred_check
      _
    $region31: #{tpu_custom_call.1} parent=1 // pred_check_branch
      %1564 = sbr.rel (0) target = $region33
    $region32: #{tpu_custom_call.1} parent=1 // pred_region
      _
    $region33: #{tpu_custom_call.1} parent=1 // pred_fallthru
      _
    // Predicated region
    $region34: #{tpu_custom_call.1} parent=1 // pred_check
      _
    $region35: #{tpu_custom_call.1} parent=1 // pred_check_branch
      %1566 = sbr.rel (0) target = $region37
    $region36: #{tpu_custom_call.1} parent=1 // pred_region
      %1568 = dma.done [#allocation4], 384
    $region37: #{tpu_custom_call.1} parent=1 // pred_fallthru
      _
    // Predicated region
    $region38: #{tpu_custom_call.1} parent=1 // pred_check
      _
    $region39: #{tpu_custom_call.1} parent=1 // pred_check_branch
      %1570 = sbr.rel (0) target = $region41
    $region40: #{tpu_custom_call.1} parent=1 // pred_region
      _
    $region41: #{tpu_custom_call.1} parent=1 // pred_fallthru
      _
    %1571 = vsyncpa [#allocation4], 1

</llo_original>
